<compile_context>
chip_gen: v6e
topology: v6e:2x2x1
jax: 0.10.0
libtpu: 0.0.40
codegen_flags: <defaults>
</compile_context>

<pallas_src>
import functools

import jax
import jax.numpy as jnp
from jax.experimental import pallas as pl
from jax.experimental.pallas import tpu as pltpu


# ----------------------------------------------------------------------------- utils
def _round_up(n, m):
    return (n + m - 1) // m * m


def _pad2d(a, rows, cols):
    r, c = a.shape
    return jnp.pad(a, ((0, rows - r), (0, cols - c)))


# ----------------------------------------------------------------------------- kernel
def _vae_kernel(
    x_ref, eps_ref,
    w_enc_ref, b_enc_ref,
    w_head_ref, b_head_ref,
    w_d1_ref, b_d1_ref,
    w_d2_ref, b_d2_ref,
    mu_ref, lv_ref, xr_ref,
):
    f32 = jnp.float32
    bf16 = jnp.bfloat16
    lp = w_head_ref.shape[1] // 2            # padded latent width (128-aligned)

    x = x_ref[...]                           # (TB, Dp) bf16
    eps = eps_ref[...]                       # (TB, Lp) f32

    # ---- encoder hidden: Linear + ReLU (bf16 MXU inputs, f32 accumulate) ----
    h = jnp.dot(x, w_enc_ref[...], preferred_element_type=f32) + b_enc_ref[...]
    h = jnp.maximum(h, 0.0)

    # ---- fused mu / log_var head: one lane-dense (TB, 2*Lp) matmul ----
    head = (jnp.dot(h.astype(bf16), w_head_ref[...], preferred_element_type=f32)
            + b_head_ref[...])
    mu = head[:, :lp]                        # 128-aligned slices -> cheap
    log_var = head[:, lp:]

    # ---- reparameterize: z = eps * exp(0.5*log_var) + mu (exp lands on EUP) ----
    std = jnp.exp(0.5 * log_var)
    z = eps * std + mu                       # padded latent lanes stay exactly 0

    # ---- decoder hidden: Linear + ReLU ----
    h2 = (jnp.dot(z.astype(bf16), w_d1_ref[...], preferred_element_type=f32)
          + b_d1_ref[...])
    h2 = jnp.maximum(h2, 0.0)

    # ---- decoder output: Linear (dec_activation=None) ----
    xr = (jnp.dot(h2.astype(bf16), w_d2_ref[...], preferred_element_type=f32)
          + b_d2_ref[...])

    mu_ref[...] = mu
    lv_ref[...] = log_var
    xr_ref[...] = xr


# ----------------------------------------------------------------------------- params
def init_vae_params(key, data_dim, latent_dim=32, enc_dim=128, dec_dim=128):
    """PyTorch-Linear-style params: W (out, in), b (out,), U(-1/sqrt(in), 1/sqrt(in))."""
    def linear(k, in_dim, out_dim):
        kw, kb = jax.random.split(k)
        bound = 1.0 / jnp.sqrt(in_dim)
        w = jax.random.uniform(kw, (out_dim, in_dim), jnp.float32, -bound, bound)
        b = jax.random.uniform(kb, (out_dim,), jnp.float32, -bound, bound)
        return w, b

    keys = jax.random.split(key, 5)
    return {
        "enc1": linear(keys[0], data_dim, enc_dim),
        "mu":   linear(keys[1], enc_dim, latent_dim),
        "lv":   linear(keys[2], enc_dim, latent_dim),
        "dec1": linear(keys[3], latent_dim, dec_dim),
        "dec2": linear(keys[4], dec_dim, data_dim),
    }


def prepare_vae_params(params):
    """One-time prep (outside the forward call): transpose to (in, out), fuse the
    mu/log_var heads, zero-pad narrow feature dims to multiples of 128 and cast the
    matmul weights to bf16 (biases stay f32, added after f32 accumulation)."""
    w_enc, b_enc = params["enc1"]      # (E, D), (E,)
    w_mu, b_mu = params["mu"]          # (L, E), (L,)
    w_lv, b_lv = params["lv"]
    w_d1, b_d1 = params["dec1"]        # (Dc, L)
    w_d2, b_d2 = params["dec2"]        # (D, Dc)

    E, D = w_enc.shape
    L = w_mu.shape[0]
    Dc = w_d1.shape[0]
    Dp, Ep, Lp, Dcp = (_round_up(v, 128) for v in (D, E, L, Dc))

    def prep_w(w_t, rp, cp):           # w_t already (in, out)
        return _pad2d(w_t.astype(jnp.bfloat16), rp, cp)

    def prep_b(b, cp):
        return _pad2d(b.reshape(1, -1).astype(jnp.float32), 1, cp)

    # fused head: columns [0:Lp] -> mu, [Lp:2Lp] -> log_var (each zero-padded to Lp)
    w_head = jnp.concatenate([_pad2d(w_mu.T, E, Lp), _pad2d(w_lv.T, E, Lp)], axis=1)
    b_head = jnp.concatenate(
        [_pad2d(b_mu.reshape(1, -1), 1, Lp), _pad2d(b_lv.reshape(1, -1), 1, Lp)], axis=1)

    return {
        "w_enc": prep_w(w_enc.T, Dp, Ep), "b_enc": prep_b(b_enc, Ep),
        "w_head": _pad2d(w_head.astype(jnp.bfloat16), Ep, 2 * Lp),
        "b_head": b_head.astype(jnp.float32),
        "w_d1": prep_w(w_d1.T, Lp, Dcp), "b_d1": prep_b(b_d1, Dcp),
        "w_d2": prep_w(w_d2.T, Dcp, Dp), "b_d2": prep_b(b_d2, Dp),
    }


# ----------------------------------------------------------------------------- forward
@functools.partial(jax.jit, static_argnames=("latent_dim", "data_dim", "batch_tile"))
def vae_forward(x, eps, prepared, *, latent_dim, data_dim, batch_tile=256):
    B = x.shape[0]
    Dp, _Ep = prepared["w_enc"].shape
    Lp = prepared["w_head"].shape[1] // 2

    TB = min(batch_tile, _round_up(B, 8))      # batch tile (multiple of 8 sublanes)
    Bp = _round_up(B, TB)

    xp = _pad2d(x.astype(jnp.bfloat16), Bp, Dp)
    epsp = _pad2d(eps.astype(jnp.float32), Bp, Lp)

    def act_spec(cols):                        # batch-tiled activations / outputs
        return pl.BlockSpec((TB, cols), lambda i: (i, 0))

    def resident_spec(a):                      # weights: constant index -> VMEM-resident
        return pl.BlockSpec(a.shape, lambda i: (0, 0))

    weight_keys = ("w_enc", "b_enc", "w_head", "b_head",
                   "w_d1", "b_d1", "w_d2", "b_d2")
    weights = tuple(prepared[k] for k in weight_keys)

    in_specs = [act_spec(Dp), act_spec(Lp)] + [resident_spec(w) for w in weights]

    out_shapes = (
        jax.ShapeDtypeStruct((Bp, Lp), jnp.float32),   # mu (padded)
        jax.ShapeDtypeStruct((Bp, Lp), jnp.float32),   # log_var (padded)
        jax.ShapeDtypeStruct((Bp, Dp), jnp.float32),   # x_recon (padded)
    )
    out_specs = (act_spec(Lp), act_spec(Lp), act_spec(Dp))

    mu_p, lv_p, xr_p = pl.pallas_call(
        _vae_kernel,
        out_shape=out_shapes,
        grid=(Bp // TB,),
        in_specs=in_specs,
        out_specs=out_specs,
        compiler_params=pltpu.CompilerParams(
            dimension_semantics=("parallel",),
            vmem_limit_bytes=32 * 1024 * 1024,
        ),
    )(xp, epsp, *weights)

    return (mu_p[:B, :latent_dim],
            lv_p[:B, :latent_dim],
            xr_p[:B, :data_dim])


# ----------------------------------------------------------------------------- refs
def _reference_forward_f32(x, eps, params):
    """Pure-JAX f32 reference mirroring the PyTorch forward (training=True)."""
    def lin(a, name):
        w, b = params[name]
        return a @ w.T + b
    h = jnp.maximum(lin(x, "enc1"), 0.0)
    mu = lin(h, "mu")
    lv = lin(h, "lv")
    z = eps * jnp.exp(0.5 * lv) + mu
    h2 = jnp.maximum(lin(z, "dec1"), 0.0)
    return mu, lv, lin(h2, "dec2")


def _reference_forward_bf16(x, eps, params):
    """Same math with the kernel's precision policy: bf16 matmul inputs, f32 accumulate."""
    def lin(a, name):
        w, b = params[name]
        return jnp.dot(a.astype(jnp.bfloat16), w.T.astype(jnp.bfloat16),
                       preferred_element_type=jnp.float32) + b
    h = jnp.maximum(lin(x, "enc1"), 0.0)
    mu = lin(h, "mu")
    lv = lin(h, "lv")
    z = eps * jnp.exp(0.5 * lv) + mu
    h2 = jnp.maximum(lin(z, "dec1"), 0.0)
    return mu, lv, lin(h2, "dec2")


# ----------------------------------------------------------------------------- main
if __name__ == "__main__":
    B = 1024            # 4 grid steps at TB=256: exercises the batch pipeline
    DATA_DIM = 64
    LATENT_DIM = 32

    key = jax.random.PRNGKey(0)
    k_x, k_eps, k_params = jax.random.split(key, 3)

    x = jax.random.normal(k_x, (B, DATA_DIM), jnp.float32)
    # TODO(synk): torch.randn_like lives inside reparameterize(); here the noise is
    # drawn in the wrapper and passed to the kernel (same distribution, explicit key).
    eps = jax.random.normal(k_eps, (B, LATENT_DIM), jnp.float32)

    params = init_vae_params(k_params, DATA_DIM, LATENT_DIM)
    prepared = prepare_vae_params(params)          # one-time: transpose/fuse/pad/bf16

    mu, log_var, x_recon = vae_forward(
        x, eps, prepared, latent_dim=LATENT_DIM, data_dim=DATA_DIM)
    jax.block_until_ready((mu, log_var, x_recon))

    # Correctness vs. a reference using the identical precision policy (tight check).
    r_mu, r_lv, r_xr = _reference_forward_bf16(x, eps, params)
    assert jnp.allclose(mu, r_mu, atol=1e-3, rtol=1e-3)
    assert jnp.allclose(log_var, r_lv, atol=1e-3, rtol=1e-3)
    assert jnp.allclose(x_recon, r_xr, atol=1e-3, rtol=1e-3)

    # Informational: deviation from full-f32 math introduced by bf16 MXU inputs.
    f_mu, f_lv, f_xr = _reference_forward_f32(x, eps, params)
    print("max|mu - f32 ref|      =", float(jnp.max(jnp.abs(mu - f_mu))))
    print("max|log_var - f32 ref| =", float(jnp.max(jnp.abs(log_var - f_lv))))
    print("max|x_recon - f32 ref| =", float(jnp.max(jnp.abs(x_recon - f_xr))))

    print("KERNEL_OK")
</pallas_src>

<mosaic_0001>
module attributes {stable_mosaic.version = 11 : i64} {
  func.func @_vae_kernel(%arg0: i32, %arg1: memref<256x128xbf16, #tpu.memory_space<vmem>>, %arg2: memref<256x128xf32, #tpu.memory_space<vmem>>, %arg3: memref<128x128xbf16, #tpu.memory_space<vmem>>, %arg4: memref<1x128xf32, #tpu.memory_space<vmem>>, %arg5: memref<128x256xbf16, #tpu.memory_space<vmem>>, %arg6: memref<1x256xf32, #tpu.memory_space<vmem>>, %arg7: memref<128x128xbf16, #tpu.memory_space<vmem>>, %arg8: memref<1x128xf32, #tpu.memory_space<vmem>>, %arg9: memref<128x128xbf16, #tpu.memory_space<vmem>>, %arg10: memref<1x128xf32, #tpu.memory_space<vmem>>, %arg11: memref<256x128xf32, #tpu.memory_space<vmem>>, %arg12: memref<256x128xf32, #tpu.memory_space<vmem>>, %arg13: memref<256x128xf32, #tpu.memory_space<vmem>>) attributes {dimension_semantics = [#tpu.dimension_semantics<parallel>], iteration_bounds = array<i64: 4>, scalar_prefetch = 0 : i64, scratch_operands = 0 : i64, tpu.core_type = #tpu.core_type<tc>, window_params = [{transform_indices = @transform_0, window_bounds = array<i64: 256, 128>}, {transform_indices = @transform_1, window_bounds = array<i64: 256, 128>}, {pipeline_mode = #tpu.pipeline_mode<synchronous>, transform_indices = @transform_2, window_bounds = array<i64: 128, 128>}, {pipeline_mode = #tpu.pipeline_mode<synchronous>, transform_indices = @transform_3, window_bounds = array<i64: 1, 128>}, {pipeline_mode = #tpu.pipeline_mode<synchronous>, transform_indices = @transform_4, window_bounds = array<i64: 128, 256>}, {pipeline_mode = #tpu.pipeline_mode<synchronous>, transform_indices = @transform_5, window_bounds = array<i64: 1, 256>}, {pipeline_mode = #tpu.pipeline_mode<synchronous>, transform_indices = @transform_6, window_bounds = array<i64: 128, 128>}, {pipeline_mode = #tpu.pipeline_mode<synchronous>, transform_indices = @transform_7, window_bounds = array<i64: 1, 128>}, {pipeline_mode = #tpu.pipeline_mode<synchronous>, transform_indices = @transform_8, window_bounds = array<i64: 128, 128>}, {pipeline_mode = #tpu.pipeline_mode<synchronous>, transform_indices = @transform_9, window_bounds = array<i64: 1, 128>}, {transform_indices = @transform_10, window_bounds = array<i64: 256, 128>}, {transform_indices = @transform_11, window_bounds = array<i64: 256, 128>}, {transform_indices = @transform_12, window_bounds = array<i64: 256, 128>}]} {
    %c0 = arith.constant 0 : index
    %c0_0 = arith.constant 0 : index
    %0 = vector.load %arg1[%c0, %c0_0] : memref<256x128xbf16, #tpu.memory_space<vmem>>, vector<256x128xbf16>
    %c0_1 = arith.constant 0 : index
    %c0_2 = arith.constant 0 : index
    %1 = vector.load %arg2[%c0_1, %c0_2] : memref<256x128xf32, #tpu.memory_space<vmem>>, vector<256x128xf32>
    %c0_3 = arith.constant 0 : index
    %c0_4 = arith.constant 0 : index
    %2 = vector.load %arg3[%c0_3, %c0_4] : memref<128x128xbf16, #tpu.memory_space<vmem>>, vector<128x128xbf16>
    %cst = arith.constant dense<0.000000e+00> : vector<256x128xf32>
    %3 = tpu.matmul %0, %2, %cst {dimension_numbers = #tpu.dot_dimension_numbers<[1], [0], [0], [1], [0, 0, 1, 1], [], []>} : vector<256x128xbf16>, vector<128x128xbf16>, vector<256x128xf32> -> vector<256x128xf32>
    %c0_5 = arith.constant 0 : index
    %c0_6 = arith.constant 0 : index
    %4 = vector.load %arg4[%c0_5, %c0_6] : memref<1x128xf32, #tpu.memory_space<vmem>>, vector<1x128xf32>
    %5 = vector.broadcast %4 : vector<1x128xf32> to vector<256x128xf32>
    %6 = arith.addf %3, %5 : vector<256x128xf32>
    %cst_7 = arith.constant 0.000000e+00 : f32
    %7 = vector.broadcast %cst_7 : f32 to vector<256x128xf32>
    %8 = arith.maximumf %6, %7 : vector<256x128xf32>
    %9 = arith.truncf %8 : vector<256x128xf32> to vector<256x128xbf16>
    %c0_8 = arith.constant 0 : index
    %c0_9 = arith.constant 0 : index
    %10 = vector.load %arg5[%c0_8, %c0_9] : memref<128x256xbf16, #tpu.memory_space<vmem>>, vector<128x256xbf16>
    %cst_10 = arith.constant dense<0.000000e+00> : vector<256x256xf32>
    %11 = tpu.matmul %9, %10, %cst_10 {dimension_numbers = #tpu.dot_dimension_numbers<[1], [0], [0], [1], [0, 0, 1, 1], [], []>} : vector<256x128xbf16>, vector<128x256xbf16>, vector<256x256xf32> -> vector<256x256xf32>
    %c0_11 = arith.constant 0 : index
    %c0_12 = arith.constant 0 : index
    %12 = vector.load %arg6[%c0_11, %c0_12] : memref<1x256xf32, #tpu.memory_space<vmem>>, vector<1x256xf32>
    %13 = vector.broadcast %12 : vector<1x256xf32> to vector<256x256xf32>
    %14 = arith.addf %11, %13 : vector<256x256xf32>
    %15 = vector.extract_strided_slice %14 {offsets = [0, 0], sizes = [256, 128], strides = [1, 1]} : vector<256x256xf32> to vector<256x128xf32>
    %16 = vector.extract_strided_slice %14 {offsets = [0, 128], sizes = [256, 128], strides = [1, 1]} : vector<256x256xf32> to vector<256x128xf32>
    %cst_13 = arith.constant 5.000000e-01 : f32
    %17 = vector.broadcast %cst_13 : f32 to vector<256x128xf32>
    %18 = arith.mulf %17, %16 : vector<256x128xf32>
    %19 = math.exp %18 : vector<256x128xf32>
    %20 = arith.mulf %1, %19 : vector<256x128xf32>
    %21 = arith.addf %20, %15 : vector<256x128xf32>
    %22 = arith.truncf %21 : vector<256x128xf32> to vector<256x128xbf16>
    %c0_14 = arith.constant 0 : index
    %c0_15 = arith.constant 0 : index
    %23 = vector.load %arg7[%c0_14, %c0_15] : memref<128x128xbf16, #tpu.memory_space<vmem>>, vector<128x128xbf16>
    %cst_16 = arith.constant dense<0.000000e+00> : vector<256x128xf32>
    %24 = tpu.matmul %22, %23, %cst_16 {dimension_numbers = #tpu.dot_dimension_numbers<[1], [0], [0], [1], [0, 0, 1, 1], [], []>} : vector<256x128xbf16>, vector<128x128xbf16>, vector<256x128xf32> -> vector<256x128xf32>
    %c0_17 = arith.constant 0 : index
    %c0_18 = arith.constant 0 : index
    %25 = vector.load %arg8[%c0_17, %c0_18] : memref<1x128xf32, #tpu.memory_space<vmem>>, vector<1x128xf32>
    %26 = vector.broadcast %25 : vector<1x128xf32> to vector<256x128xf32>
    %27 = arith.addf %24, %26 : vector<256x128xf32>
    %cst_19 = arith.constant 0.000000e+00 : f32
    %28 = vector.broadcast %cst_19 : f32 to vector<256x128xf32>
    %29 = arith.maximumf %27, %28 : vector<256x128xf32>
    %30 = arith.truncf %29 : vector<256x128xf32> to vector<256x128xbf16>
    %c0_20 = arith.constant 0 : index
    %c0_21 = arith.constant 0 : index
    %31 = vector.load %arg9[%c0_20, %c0_21] : memref<128x128xbf16, #tpu.memory_space<vmem>>, vector<128x128xbf16>
    %cst_22 = arith.constant dense<0.000000e+00> : vector<256x128xf32>
    %32 = tpu.matmul %30, %31, %cst_22 {dimension_numbers = #tpu.dot_dimension_numbers<[1], [0], [0], [1], [0, 0, 1, 1], [], []>} : vector<256x128xbf16>, vector<128x128xbf16>, vector<256x128xf32> -> vector<256x128xf32>
    %c0_23 = arith.constant 0 : index
    %c0_24 = arith.constant 0 : index
    %33 = vector.load %arg10[%c0_23, %c0_24] : memref<1x128xf32, #tpu.memory_space<vmem>>, vector<1x128xf32>
    %34 = vector.broadcast %33 : vector<1x128xf32> to vector<256x128xf32>
    %35 = arith.addf %32, %34 : vector<256x128xf32>
    %c0_25 = arith.constant 0 : index
    %c0_26 = arith.constant 0 : index
    %36 = vector.load %arg11[%c0_25, %c0_26] : memref<256x128xf32, #tpu.memory_space<vmem>>, vector<256x128xf32>
    tpu.vector_store %arg11[%c0_25, %c0_26], %15 {strides = array<i32>} : memref<256x128xf32, #tpu.memory_space<vmem>>, vector<256x128xf32>,
    %c0_27 = arith.constant 0 : index
    %c0_28 = arith.constant 0 : index
    %37 = vector.load %arg12[%c0_27, %c0_28] : memref<256x128xf32, #tpu.memory_space<vmem>>, vector<256x128xf32>
    tpu.vector_store %arg12[%c0_27, %c0_28], %16 {strides = array<i32>} : memref<256x128xf32, #tpu.memory_space<vmem>>, vector<256x128xf32>,
    %c0_29 = arith.constant 0 : index
    %c0_30 = arith.constant 0 : index
    %38 = vector.load %arg13[%c0_29, %c0_30] : memref<256x128xf32, #tpu.memory_space<vmem>>, vector<256x128xf32>
    tpu.vector_store %arg13[%c0_29, %c0_30], %35 {strides = array<i32>} : memref<256x128xf32, #tpu.memory_space<vmem>>, vector<256x128xf32>,
    return
  }
  func.func @transform_0(%arg0: i32) -> (i32, i32) {
    %c0_i32 = arith.constant 0 : i32
    %c0_i32_0 = arith.constant 0 : i32
    return %arg0, %c0_i32 : i32, i32
  }
  func.func @transform_1(%arg0: i32) -> (i32, i32) {
    %c0_i32 = arith.constant 0 : i32
    %c0_i32_0 = arith.constant 0 : i32
    return %arg0, %c0_i32 : i32, i32
  }
  func.func @transform_2(%arg0: i32) -> (i32, i32) {
    %c0_i32 = arith.constant 0 : i32
    %c0_i32_0 = arith.constant 0 : i32
    %c0_i32_1 = arith.constant 0 : i32
    return %c0_i32, %c0_i32_0 : i32, i32
  }
  func.func @transform_3(%arg0: i32) -> (i32, i32) {
    %c0_i32 = arith.constant 0 : i32
    %c0_i32_0 = arith.constant 0 : i32
    %c0_i32_1 = arith.constant 0 : i32
    return %c0_i32, %c0_i32_0 : i32, i32
  }
  func.func @transform_4(%arg0: i32) -> (i32, i32) {
    %c0_i32 = arith.constant 0 : i32
    %c0_i32_0 = arith.constant 0 : i32
    %c0_i32_1 = arith.constant 0 : i32
    return %c0_i32, %c0_i32_0 : i32, i32
  }
  func.func @transform_5(%arg0: i32) -> (i32, i32) {
    %c0_i32 = arith.constant 0 : i32
    %c0_i32_0 = arith.constant 0 : i32
    %c0_i32_1 = arith.constant 0 : i32
    return %c0_i32, %c0_i32_0 : i32, i32
  }
  func.func @transform_6(%arg0: i32) -> (i32, i32) {
    %c0_i32 = arith.constant 0 : i32
    %c0_i32_0 = arith.constant 0 : i32
    %c0_i32_1 = arith.constant 0 : i32
    return %c0_i32, %c0_i32_0 : i32, i32
  }
  func.func @transform_7(%arg0: i32) -> (i32, i32) {
    %c0_i32 = arith.constant 0 : i32
    %c0_i32_0 = arith.constant 0 : i32
    %c0_i32_1 = arith.constant 0 : i32
    return %c0_i32, %c0_i32_0 : i32, i32
  }
  func.func @transform_8(%arg0: i32) -> (i32, i32) {
    %c0_i32 = arith.constant 0 : i32
    %c0_i32_0 = arith.constant 0 : i32
    %c0_i32_1 = arith.constant 0 : i32
    return %c0_i32, %c0_i32_0 : i32, i32
  }
  func.func @transform_9(%arg0: i32) -> (i32, i32) {
    %c0_i32 = arith.constant 0 : i32
    %c0_i32_0 = arith.constant 0 : i32
    %c0_i32_1 = arith.constant 0 : i32
    return %c0_i32, %c0_i32_0 : i32, i32
  }
  func.func @transform_10(%arg0: i32) -> (i32, i32) {
    %c0_i32 = arith.constant 0 : i32
    %c0_i32_0 = arith.constant 0 : i32
    return %arg0, %c0_i32 : i32, i32
  }
  func.func @transform_11(%arg0: i32) -> (i32, i32) {
    %c0_i32 = arith.constant 0 : i32
    %c0_i32_0 = arith.constant 0 : i32
    return %arg0, %c0_i32 : i32, i32
  }
  func.func @transform_12(%arg0: i32) -> (i32, i32) {
    %c0_i32 = arith.constant 0 : i32
    %c0_i32_0 = arith.constant 0 : i32
    return %arg0, %c0_i32 : i32, i32
  }
}

</mosaic_0001>

<llo_original>
// kernel: vae_forward.1
$region0: #{vae_forward.1}
  #allocation0 [shape = 'u32[]', space=smem, size = 0x4, offset = 0x4, fixed_abs, tag = 'smem constant byte address 0x4 - core index']
  #allocation1 [shape = 'u32[144,128]{1,0:T(1,128)}', space=vmem, size = 0x12000, scoped, tag = 'internal scratch']
  %s0 = inlined_call_operand.vmem [shape: bf16[1024,128], index: 0, kind: input, shape index: {}]
  %s1 = inlined_call_operand.vmem [shape: f32[1024,128], index: 1, kind: input, shape index: {}]
  %s2 = inlined_call_operand.vmem [shape: bf16[128,128], index: 2, kind: input, shape index: {}]
  %s3 = inlined_call_operand.vmem [shape: f32[1,128], index: 3, kind: input, shape index: {}]
  %s4 = inlined_call_operand.vmem [shape: bf16[128,256], index: 4, kind: input, shape index: {}]
  %s5 = inlined_call_operand.vmem [shape: f32[1,256], index: 5, kind: input, shape index: {}]
  %s6 = inlined_call_operand.vmem [shape: bf16[128,128], index: 6, kind: input, shape index: {}]
  %s7 = inlined_call_operand.vmem [shape: f32[1,128], index: 7, kind: input, shape index: {}]
  %s8 = inlined_call_operand.vmem [shape: bf16[128,128], index: 8, kind: input, shape index: {}]
  %s9 = inlined_call_operand.vmem [shape: f32[1,128], index: 9, kind: input, shape index: {}]
  %s10 = inlined_call_operand.vmem [shape: f32[1024,128], index: 10, kind: output, shape index: {0}]
  %s11 = inlined_call_operand.vmem [shape: f32[1024,128], index: 11, kind: output, shape index: {1}]
  %s12 = inlined_call_operand.vmem [shape: f32[1024,128], index: 12, kind: output, shape index: {2}]
  %13 = xla_tuple %s10, %s11, %s12
  %s14 = sld [smem:[#allocation0]]
  $region89: #{vae_forward.1} parent=0
    _
  %s16 = ssub.s32 1, %s14
  %s17 = scalar_select 0, %s16, %s14
  loop: start=0, step=1, limit=6
  $region2: #{vae_forward.1} parent=0 // loop_pre_header
    _
  $region3: #{vae_forward.1} parent=0 // loop_header
    %s19 = sphi 0, %s23
    %p20 = scmp.ge.s32.totalorder %s19, 6
    %s29 = sphi 0, %s31
    %s32 = sphi 0, %s29
    %s33 = sphi 0, %s32
    %s49 = sphi 0, %s33
    %s55 = sphi 0, %s57
    %s58 = sphi 0, %s55
    %s59 = sphi 0, %s58
    %s75 = sphi 0, %s59
    %s79 = sphi 0, %s79
    %s81 = sphi 0, %s79
    %s82 = sphi 0, %s81
    %s96 = sphi 0, %s82
    %s100 = sphi 0, %s100
    %s102 = sphi 0, %s100
    %s103 = sphi 0, %s102
    %s117 = sphi 0, %s103
    %s121 = sphi 0, %s121
    %s123 = sphi 0, %s121
    %s124 = sphi 0, %s123
    %s138 = sphi 0, %s124
    %s142 = sphi 0, %s142
    %s144 = sphi 0, %s142
    %s145 = sphi 0, %s144
    %s159 = sphi 0, %s145
    %s163 = sphi 0, %s163
    %s165 = sphi 0, %s163
    %s166 = sphi 0, %s165
    %s180 = sphi 0, %s166
    %s184 = sphi 0, %s184
    %s186 = sphi 0, %s184
    %s187 = sphi 0, %s186
    %s201 = sphi 0, %s187
    %s205 = sphi 0, %s205
    %s207 = sphi 0, %s205
    %s208 = sphi 0, %s207
    %s222 = sphi 0, %s208
    %s226 = sphi 0, %s226
    %s228 = sphi 0, %s226
    %s229 = sphi 0, %s228
    %s243 = sphi 0, %s229
    %s249 = sphi 0, %s251
    %s252 = sphi 0, %s249
    %s253 = sphi 0, %s252
    %s269 = sphi 0, %s253
    %s275 = sphi 0, %s277
    %s278 = sphi 0, %s275
    %s279 = sphi 0, %s278
    %s295 = sphi 0, %s279
    %s301 = sphi 0, %s303
    %s304 = sphi 0, %s301
    %s305 = sphi 0, %s304
    %s321 = sphi 0, %s305
  $region4: #{vae_forward.1} parent=0 // loop_header_branch
    %22 = sbr.rel (%p20) target = $region8
  $region5: #{vae_forward.1} parent=0 // loop_body
    %s24 = ssub.s32 %s19, 1
    %s25 = ssub.s32 %s19, 2
    %s26 = sadd.s32 %s19, 1
    %s27 = ssub.s32 %s19, %s26
    %p28 = scmp.eq.s32.totalorder %s27, 0
    %s30 = sadd.s32 %s29, 1
    %s31 = scalar_select %p28, %s29, %s30
    %p34 = pneg %p28
    %p35 = scmp.eq.s32.totalorder %s19, 3
    %p36 = por %p34, %p35
    %p37 = scmp.ne.s32.totalorder %s29, %s32
    %p38 = scmp.eq.s32.totalorder %s19, 0
    %p39 = por %p37, %p38
    %p40 = scmp.ne.s32.totalorder %s29, %s32
    %p41 = scmp.eq.s32.totalorder %s24, 3
    %p42 = por %p40, %p41
    %p43 = scmp.ne.s32.totalorder %s32, %s33
    %p44 = scmp.eq.s32.totalorder %s24, 0
    %p45 = por %p43, %p44
    %p46 = scmp.ne.s32.totalorder %s32, %s33
    %p47 = scmp.eq.s32.totalorder %s25, 3
    %p48 = por %p46, %p47
    %p50 = scmp.ne.s32.totalorder %s33, %s49
    %p51 = scmp.eq.s32.totalorder %s25, 0
    %p52 = por %p50, %p51
    %s53 = ssub.s32 %s19, %s26
    %p54 = scmp.eq.s32.totalorder %s53, 0
    %s56 = sadd.s32 %s55, 1
    %s57 = scalar_select %p54, %s55, %s56
    %p60 = pneg %p54
    %p61 = scmp.eq.s32.totalorder %s19, 3
    %p62 = por %p60, %p61
    %p63 = scmp.ne.s32.totalorder %s55, %s58
    %p64 = scmp.eq.s32.totalorder %s19, 0
    %p65 = por %p63, %p64
    %p66 = scmp.ne.s32.totalorder %s55, %s58
    %p67 = scmp.eq.s32.totalorder %s24, 3
    %p68 = por %p66, %p67
    %p69 = scmp.ne.s32.totalorder %s58, %s59
    %p70 = scmp.eq.s32.totalorder %s24, 0
    %p71 = por %p69, %p70
    %p72 = scmp.ne.s32.totalorder %s58, %s59
    %p73 = scmp.eq.s32.totalorder %s25, 3
    %p74 = por %p72, %p73
    %p76 = scmp.ne.s32.totalorder %s59, %s75
    %p77 = scmp.eq.s32.totalorder %s25, 0
    %p78 = por %p76, %p77
    %s80 = sadd.s32 %s79, 1
    %p83 = scmp.eq.s32.totalorder %s19, 3
    %p84 = scmp.ne.s32.totalorder %s79, %s81
    %p85 = scmp.eq.s32.totalorder %s19, 0
    %p86 = por %p84, %p85
    %p87 = scmp.ne.s32.totalorder %s79, %s81
    %p88 = scmp.eq.s32.totalorder %s24, 3
    %p89 = por %p87, %p88
    %p90 = scmp.ne.s32.totalorder %s81, %s82
    %p91 = scmp.eq.s32.totalorder %s24, 0
    %p92 = por %p90, %p91
    %p93 = scmp.ne.s32.totalorder %s81, %s82
    %p94 = scmp.eq.s32.totalorder %s25, 3
    %p95 = por %p93, %p94
    %p97 = scmp.ne.s32.totalorder %s82, %s96
    %p98 = scmp.eq.s32.totalorder %s25, 0
    %p99 = por %p97, %p98
    %s101 = sadd.s32 %s100, 1
    %p104 = scmp.eq.s32.totalorder %s19, 3
    %p105 = scmp.ne.s32.totalorder %s100, %s102
    %p106 = scmp.eq.s32.totalorder %s19, 0
    %p107 = por %p105, %p106
    %p108 = scmp.ne.s32.totalorder %s100, %s102
    %p109 = scmp.eq.s32.totalorder %s24, 3
    %p110 = por %p108, %p109
    %p111 = scmp.ne.s32.totalorder %s102, %s103
    %p112 = scmp.eq.s32.totalorder %s24, 0
    %p113 = por %p111, %p112
    %p114 = scmp.ne.s32.totalorder %s102, %s103
    %p115 = scmp.eq.s32.totalorder %s25, 3
    %p116 = por %p114, %p115
    %p118 = scmp.ne.s32.totalorder %s103, %s117
    %p119 = scmp.eq.s32.totalorder %s25, 0
    %p120 = por %p118, %p119
    %s122 = sadd.s32 %s121, 1
    %p125 = scmp.eq.s32.totalorder %s19, 3
    %p126 = scmp.ne.s32.totalorder %s121, %s123
    %p127 = scmp.eq.s32.totalorder %s19, 0
    %p128 = por %p126, %p127
    %p129 = scmp.ne.s32.totalorder %s121, %s123
    %p130 = scmp.eq.s32.totalorder %s24, 3
    %p131 = por %p129, %p130
    %p132 = scmp.ne.s32.totalorder %s123, %s124
    %p133 = scmp.eq.s32.totalorder %s24, 0
    %p134 = por %p132, %p133
    %p135 = scmp.ne.s32.totalorder %s123, %s124
    %p136 = scmp.eq.s32.totalorder %s25, 3
    %p137 = por %p135, %p136
    %p139 = scmp.ne.s32.totalorder %s124, %s138
    %p140 = scmp.eq.s32.totalorder %s25, 0
    %p141 = por %p139, %p140
    %s143 = sadd.s32 %s142, 1
    %p146 = scmp.eq.s32.totalorder %s19, 3
    %p147 = scmp.ne.s32.totalorder %s142, %s144
    %p148 = scmp.eq.s32.totalorder %s19, 0
    %p149 = por %p147, %p148
    %p150 = scmp.ne.s32.totalorder %s142, %s144
    %p151 = scmp.eq.s32.totalorder %s24, 3
    %p152 = por %p150, %p151
    %p153 = scmp.ne.s32.totalorder %s144, %s145
    %p154 = scmp.eq.s32.totalorder %s24, 0
    %p155 = por %p153, %p154
    %p156 = scmp.ne.s32.totalorder %s144, %s145
    %p157 = scmp.eq.s32.totalorder %s25, 3
    %p158 = por %p156, %p157
    %p160 = scmp.ne.s32.totalorder %s145, %s159
    %p161 = scmp.eq.s32.totalorder %s25, 0
    %p162 = por %p160, %p161
    %s164 = sadd.s32 %s163, 1
    %p167 = scmp.eq.s32.totalorder %s19, 3
    %p168 = scmp.ne.s32.totalorder %s163, %s165
    %p169 = scmp.eq.s32.totalorder %s19, 0
    %p170 = por %p168, %p169
    %p171 = scmp.ne.s32.totalorder %s163, %s165
    %p172 = scmp.eq.s32.totalorder %s24, 3
    %p173 = por %p171, %p172
    %p174 = scmp.ne.s32.totalorder %s165, %s166
    %p175 = scmp.eq.s32.totalorder %s24, 0
    %p176 = por %p174, %p175
    %p177 = scmp.ne.s32.totalorder %s165, %s166
    %p178 = scmp.eq.s32.totalorder %s25, 3
    %p179 = por %p177, %p178
    %p181 = scmp.ne.s32.totalorder %s166, %s180
    %p182 = scmp.eq.s32.totalorder %s25, 0
    %p183 = por %p181, %p182
    %s185 = sadd.s32 %s184, 1
    %p188 = scmp.eq.s32.totalorder %s19, 3
    %p189 = scmp.ne.s32.totalorder %s184, %s186
    %p190 = scmp.eq.s32.totalorder %s19, 0
    %p191 = por %p189, %p190
    %p192 = scmp.ne.s32.totalorder %s184, %s186
    %p193 = scmp.eq.s32.totalorder %s24, 3
    %p194 = por %p192, %p193
    %p195 = scmp.ne.s32.totalorder %s186, %s187
    %p196 = scmp.eq.s32.totalorder %s24, 0
    %p197 = por %p195, %p196
    %p198 = scmp.ne.s32.totalorder %s186, %s187
    %p199 = scmp.eq.s32.totalorder %s25, 3
    %p200 = por %p198, %p199
    %p202 = scmp.ne.s32.totalorder %s187, %s201
    %p203 = scmp.eq.s32.totalorder %s25, 0
    %p204 = por %p202, %p203
    %s206 = sadd.s32 %s205, 1
    %p209 = scmp.eq.s32.totalorder %s19, 3
    %p210 = scmp.ne.s32.totalorder %s205, %s207
    %p211 = scmp.eq.s32.totalorder %s19, 0
    %p212 = por %p210, %p211
    %p213 = scmp.ne.s32.totalorder %s205, %s207
    %p214 = scmp.eq.s32.totalorder %s24, 3
    %p215 = por %p213, %p214
    %p216 = scmp.ne.s32.totalorder %s207, %s208
    %p217 = scmp.eq.s32.totalorder %s24, 0
    %p218 = por %p216, %p217
    %p219 = scmp.ne.s32.totalorder %s207, %s208
    %p220 = scmp.eq.s32.totalorder %s25, 3
    %p221 = por %p219, %p220
    %p223 = scmp.ne.s32.totalorder %s208, %s222
    %p224 = scmp.eq.s32.totalorder %s25, 0
    %p225 = por %p223, %p224
    %s227 = sadd.s32 %s226, 1
    %p230 = scmp.eq.s32.totalorder %s19, 3
    %p231 = scmp.ne.s32.totalorder %s226, %s228
    %p232 = scmp.eq.s32.totalorder %s19, 0
    %p233 = por %p231, %p232
    %p234 = scmp.ne.s32.totalorder %s226, %s228
    %p235 = scmp.eq.s32.totalorder %s24, 3
    %p236 = por %p234, %p235
    %p237 = scmp.ne.s32.totalorder %s228, %s229
    %p238 = scmp.eq.s32.totalorder %s24, 0
    %p239 = por %p237, %p238
    %p240 = scmp.ne.s32.totalorder %s228, %s229
    %p241 = scmp.eq.s32.totalorder %s25, 3
    %p242 = por %p240, %p241
    %p244 = scmp.ne.s32.totalorder %s229, %s243
    %p245 = scmp.eq.s32.totalorder %s25, 0
    %p246 = por %p244, %p245
    %s247 = ssub.s32 %s19, %s26
    %p248 = scmp.eq.s32.totalorder %s247, 0
    %s250 = sadd.s32 %s249, 1
    %s251 = scalar_select %p248, %s249, %s250
    %p254 = pneg %p248
    %p255 = scmp.eq.s32.totalorder %s19, 3
    %p256 = por %p254, %p255
    %p257 = scmp.ne.s32.totalorder %s249, %s252
    %p258 = scmp.eq.s32.totalorder %s19, 0
    %p259 = por %p257, %p258
    %p260 = scmp.ne.s32.totalorder %s249, %s252
    %p261 = scmp.eq.s32.totalorder %s24, 3
    %p262 = por %p260, %p261
    %p263 = scmp.ne.s32.totalorder %s252, %s253
    %p264 = scmp.eq.s32.totalorder %s24, 0
    %p265 = por %p263, %p264
    %p266 = scmp.ne.s32.totalorder %s252, %s253
    %p267 = scmp.eq.s32.totalorder %s25, 3
    %p268 = por %p266, %p267
    %p270 = scmp.ne.s32.totalorder %s253, %s269
    %p271 = scmp.eq.s32.totalorder %s25, 0
    %p272 = por %p270, %p271
    %s273 = ssub.s32 %s19, %s26
    %p274 = scmp.eq.s32.totalorder %s273, 0
    %s276 = sadd.s32 %s275, 1
    %s277 = scalar_select %p274, %s275, %s276
    %p280 = pneg %p274
    %p281 = scmp.eq.s32.totalorder %s19, 3
    %p282 = por %p280, %p281
    %p283 = scmp.ne.s32.totalorder %s275, %s278
    %p284 = scmp.eq.s32.totalorder %s19, 0
    %p285 = por %p283, %p284
    %p286 = scmp.ne.s32.totalorder %s275, %s278
    %p287 = scmp.eq.s32.totalorder %s24, 3
    %p288 = por %p286, %p287
    %p289 = scmp.ne.s32.totalorder %s278, %s279
    %p290 = scmp.eq.s32.totalorder %s24, 0
    %p291 = por %p289, %p290
    %p292 = scmp.ne.s32.totalorder %s278, %s279
    %p293 = scmp.eq.s32.totalorder %s25, 3
    %p294 = por %p292, %p293
    %p296 = scmp.ne.s32.totalorder %s279, %s295
    %p297 = scmp.eq.s32.totalorder %s25, 0
    %p298 = por %p296, %p297
    %s299 = ssub.s32 %s19, %s26
    %p300 = scmp.eq.s32.totalorder %s299, 0
    %s302 = sadd.s32 %s301, 1
    %s303 = scalar_select %p300, %s301, %s302
    %p306 = pneg %p300
    %p307 = scmp.eq.s32.totalorder %s19, 3
    %p308 = por %p306, %p307
    %p309 = scmp.ne.s32.totalorder %s301, %s304
    %p310 = scmp.eq.s32.totalorder %s19, 0
    %p311 = por %p309, %p310
    %p312 = scmp.ne.s32.totalorder %s301, %s304
    %p313 = scmp.eq.s32.totalorder %s24, 3
    %p314 = por %p312, %p313
    %p315 = scmp.ne.s32.totalorder %s304, %s305
    %p316 = scmp.eq.s32.totalorder %s24, 0
    %p317 = por %p315, %p316
    %p318 = scmp.ne.s32.totalorder %s304, %s305
    %p319 = scmp.eq.s32.totalorder %s25, 3
    %p320 = por %p318, %p319
    %p322 = scmp.ne.s32.totalorder %s305, %s321
    %p323 = scmp.eq.s32.totalorder %s25, 0
    %p324 = por %p322, %p323
    %p325 = scmp.le.s32.totalorder 1, %s19
    %p326 = scmp.lt.s32.totalorder %s19, 5
    %p327 = pnand %p325, %p326
    %p328 = pneg %p327
    // Predicated region
    $region9: #{vae_forward.1} parent=5 // pred_check
      _
    $region10: #{vae_forward.1} parent=5 // pred_check_branch
      %330 = sbr.rel (%p327) target = $region12
    $region11: #{vae_forward.1} parent=5 // pred_region
      %s331 = ssub.s32 %s19, 1
      // Predicated region
      $region13: #{vae_forward.1} parent=11 // pred_check
        %p332 = pneg %p92
      $region14: #{vae_forward.1} parent=11 // pred_check_branch
        %334 = sbr.rel (%p332) target = $region16
      $region15: #{vae_forward.1} parent=11 // pred_region
        _
      $region16: #{vae_forward.1} parent=11 // pred_fallthru
        _
      // Predicated region
      $region17: #{vae_forward.1} parent=11 // pred_check
        %p335 = pneg %p113
      $region18: #{vae_forward.1} parent=11 // pred_check_branch
        %337 = sbr.rel (%p335) target = $region20
      $region19: #{vae_forward.1} parent=11 // pred_region
        _
      $region20: #{vae_forward.1} parent=11 // pred_fallthru
        _
      // Predicated region
      $region21: #{vae_forward.1} parent=11 // pred_check
        %p338 = pneg %p134
      $region22: #{vae_forward.1} parent=11 // pred_check_branch
        %340 = sbr.rel (%p338) target = $region24
      $region23: #{vae_forward.1} parent=11 // pred_region
        _
      $region24: #{vae_forward.1} parent=11 // pred_fallthru
        _
      // Predicated region
      $region25: #{vae_forward.1} parent=11 // pred_check
        %p341 = pneg %p155
      $region26: #{vae_forward.1} parent=11 // pred_check_branch
        %343 = sbr.rel (%p341) target = $region28
      $region27: #{vae_forward.1} parent=11 // pred_region
        _
      $region28: #{vae_forward.1} parent=11 // pred_fallthru
        _
      // Predicated region
      $region29: #{vae_forward.1} parent=11 // pred_check
        %p344 = pneg %p176
      $region30: #{vae_forward.1} parent=11 // pred_check_branch
        %346 = sbr.rel (%p344) target = $region32
      $region31: #{vae_forward.1} parent=11 // pred_region
        _
      $region32: #{vae_forward.1} parent=11 // pred_fallthru
        _
      // Predicated region
      $region33: #{vae_forward.1} parent=11 // pred_check
        %p347 = pneg %p197
      $region34: #{vae_forward.1} parent=11 // pred_check_branch
        %349 = sbr.rel (%p347) target = $region36
      $region35: #{vae_forward.1} parent=11 // pred_region
        _
      $region36: #{vae_forward.1} parent=11 // pred_fallthru
        _
      // Predicated region
      $region37: #{vae_forward.1} parent=11 // pred_check
        %p350 = pneg %p218
      $region38: #{vae_forward.1} parent=11 // pred_check_branch
        %352 = sbr.rel (%p350) target = $region40
      $region39: #{vae_forward.1} parent=11 // pred_region
        _
      $region40: #{vae_forward.1} parent=11 // pred_fallthru
        _
      // Predicated region
      $region41: #{vae_forward.1} parent=11 // pred_check
        %p353 = pneg %p239
      $region42: #{vae_forward.1} parent=11 // pred_check_branch
        %355 = sbr.rel (%p353) target = $region44
      $region43: #{vae_forward.1} parent=11 // pred_region
        _
      $region44: #{vae_forward.1} parent=11 // pred_fallthru
        _
    $region12: #{vae_forward.1} parent=5 // pred_fallthru
      _
    %p356 = scmp.lt.s32.totalorder %s19, 4
    // Predicated region
    $region45: #{vae_forward.1} parent=5 // pred_check
      %p357 = pneg %p356
    $region46: #{vae_forward.1} parent=5 // pred_check_branch
      %359 = sbr.rel (%p357) target = $region48
    $region47: #{vae_forward.1} parent=5 // pred_region
      // Predicated region
      $region49: #{vae_forward.1} parent=47 // pred_check
        %p360 = pneg %p39
      $region50: #{vae_forward.1} parent=47 // pred_check_branch
        %362 = sbr.rel (%p360) target = $region52
      $region51: #{vae_forward.1} parent=47 // pred_region
        %s363 = smul.u32 32, %s19
        %p364 = scmp.lt.s32.totalorder %s363, 127
        %s365 = scalar_select %p364, %s363, 127
        %s366 = smul.addr %s365, 4
        %s367 = scalar_lea.vmem %s0, %s366
        %s368 = smul.u32 32, %s19
      $region52: #{vae_forward.1} parent=47 // pred_fallthru
        _
      // Predicated region
      $region53: #{vae_forward.1} parent=47 // pred_check
        %p369 = pneg %p65
      $region54: #{vae_forward.1} parent=47 // pred_check_branch
        %371 = sbr.rel (%p369) target = $region56
      $region55: #{vae_forward.1} parent=47 // pred_region
        %s372 = smul.u32 32, %s19
        %p373 = scmp.lt.s32.totalorder %s372, 127
        %s374 = scalar_select %p373, %s372, 127
        %s375 = smul.addr %s374, 8
        %s376 = scalar_lea.vmem %s1, %s375
        %s377 = smul.u32 32, %s19
      $region56: #{vae_forward.1} parent=47 // pred_fallthru
        _
    $region48: #{vae_forward.1} parent=5 // pred_fallthru
      _
    %p378 = scmp.le.s32.totalorder 1, %s19
    %p379 = scmp.lt.s32.totalorder %s19, 5
    %p380 = pnand %p378, %p379
    %p381 = pneg %p380
    // Predicated region
    $region57: #{vae_forward.1} parent=5 // pred_check
      _
    $region58: #{vae_forward.1} parent=5 // pred_check_branch
      %383 = sbr.rel (%p380) target = $region60
    $region59: #{vae_forward.1} parent=5 // pred_region
      %s384 = ssub.s32 %s19, 1
      %s385 = smul.u32 32, %s24
      %p386 = scmp.lt.s32.totalorder %s385, 127
      %s387 = scalar_select %p386, %s385, 127
      %s388 = smul.addr %s387, 4
      %s389 = scalar_lea.vmem %s0, %s388
      %p390 = pneg %p45
      %p391 = pneg %p42
      %s392 = smul.u32 32, %s24
      %p393 = scmp.lt.s32.totalorder %s392, 127
      %s394 = scalar_select %p393, %s392, 127
      %s395 = smul.addr %s394, 8
      %s396 = scalar_lea.vmem %s1, %s395
      %p397 = pneg %p71
      %p398 = pneg %p68
      %p399 = pneg %p92
      %p400 = pneg %p89
      %p401 = pneg %p113
      %p402 = pneg %p110
      %p403 = pneg %p134
      %p404 = pneg %p131
      %p405 = pneg %p155
      %p406 = pneg %p152
      %p407 = pneg %p176
      %p408 = pneg %p173
      %p409 = pneg %p197
      %p410 = pneg %p194
      %p411 = pneg %p218
      %p412 = pneg %p215
      %p413 = pneg %p239
      %p414 = pneg %p236
      %p415 = pneg %p265
      %p416 = pneg %p262
      %s417 = smul.u32 32, %s24
      %p418 = scmp.lt.s32.totalorder %s417, 127
      %s419 = scalar_select %p418, %s417, 127
      %s420 = smul.addr %s419, 8
      %s421 = scalar_lea.vmem %s10, %s420
      %p422 = pneg %p291
      %p423 = pneg %p288
      %s424 = smul.u32 32, %s24
      %p425 = scmp.lt.s32.totalorder %s424, 127
      %s426 = scalar_select %p425, %s424, 127
      %s427 = smul.addr %s426, 8
      %s428 = scalar_lea.vmem %s11, %s427
      %p429 = pneg %p317
      %p430 = pneg %p314
      %s431 = smul.u32 32, %s24
      %p432 = scmp.lt.s32.totalorder %s431, 127
      %s433 = scalar_select %p432, %s431, 127
      %s434 = smul.addr %s433, 8
      %s435 = scalar_lea.vmem %s12, %s434
      %s436 = smul.u32 32, %s24
      %p437 = scmp.lt.s32.totalorder %s436, 127
      %s438 = scalar_select %p437, %s436, 127
      %s439 = smul.addr %s438, 4
      %s440 = scalar_lea.vmem %s0, %s439
      %s441 = smul.u32 32, %s24
      %s442 = smul.u32 32, %s24
      %p443 = scmp.lt.s32.totalorder %s442, 127
      %s444 = scalar_select %p443, %s442, 127
      %s445 = smul.addr %s444, 8
      %s446 = scalar_lea.vmem %s1, %s445
      %s447 = smul.u32 32, %s24
      %s448 = smul.u32 32, %s24
      %p449 = scmp.lt.s32.totalorder %s448, 127
      %s450 = scalar_select %p449, %s448, 127
      %s451 = smul.addr %s450, 8
      %s452 = scalar_lea.vmem %s10, %s451
      %s453 = smul.u32 32, %s24
      %s454 = smul.u32 32, %s24
      %p455 = scmp.lt.s32.totalorder %s454, 127
      %s456 = scalar_select %p455, %s454, 127
      %s457 = smul.addr %s456, 8
      %s458 = scalar_lea.vmem %s11, %s457
      %s459 = smul.u32 32, %s24
      %s460 = smul.u32 32, %s24
      %p461 = scmp.lt.s32.totalorder %s460, 127
      %s462 = scalar_select %p461, %s460, 127
      %s463 = smul.addr %s462, 8
      %s464 = scalar_lea.vmem %s12, %s463
      %s465 = smul.u32 32, %s24
      %v467 = vld [vmem:[%s440] sm:$0xf]
      %v468 = vld [vmem:[%s440 + $0x4] sm:$0xf]
      %v469 = vld [vmem:[%s440 + $0x8] sm:$0xf]
      %v470 = vld [vmem:[%s440 + $0xc] sm:$0xf]
      %v471 = vld [vmem:[%s440 + $0x10] sm:$0xf]
      %v472 = vld [vmem:[%s440 + $0x14] sm:$0xf]
      %v473 = vld [vmem:[%s440 + $0x18] sm:$0xf]
      %v474 = vld [vmem:[%s440 + $0x1c] sm:$0xf]
      %v475 = vld [vmem:[%s440 + $0x20] sm:$0xf]
      %v476 = vld [vmem:[%s440 + $0x24] sm:$0xf]
      %v477 = vld [vmem:[%s440 + $0x28] sm:$0xf]
      %v478 = vld [vmem:[%s440 + $0x2c] sm:$0xf]
      %v479 = vld [vmem:[%s440 + $0x30] sm:$0xf]
      %v480 = vld [vmem:[%s440 + $0x34] sm:$0xf]
      %v481 = vld [vmem:[%s440 + $0x38] sm:$0xf]
      %v482 = vld [vmem:[%s440 + $0x3c] sm:$0xf]
      %v483 = vld [vmem:[%s440 + $0x40] sm:$0xf]
      %v484 = vld [vmem:[%s440 + $0x44] sm:$0xf]
      %v485 = vld [vmem:[%s440 + $0x48] sm:$0xf]
      %v486 = vld [vmem:[%s440 + $0x4c] sm:$0xf]
      %v487 = vld [vmem:[%s440 + $0x50] sm:$0xf]
      %v488 = vld [vmem:[%s440 + $0x54] sm:$0xf]
      %v489 = vld [vmem:[%s440 + $0x58] sm:$0xf]
      %v490 = vld [vmem:[%s440 + $0x5c] sm:$0xf]
      %v491 = vld [vmem:[%s440 + $0x60] sm:$0xf]
      %v492 = vld [vmem:[%s440 + $0x64] sm:$0xf]
      %v493 = vld [vmem:[%s440 + $0x68] sm:$0xf]
      %v494 = vld [vmem:[%s440 + $0x6c] sm:$0xf]
      %v495 = vld [vmem:[%s440 + $0x70] sm:$0xf]
      %v496 = vld [vmem:[%s440 + $0x74] sm:$0xf]
      %v497 = vld [vmem:[%s440 + $0x78] sm:$0xf]
      %v498 = vld [vmem:[%s440 + $0x7c] sm:$0xf]
      %v499 = vld [vmem:[%s446] sm:$0xff]
      %v500 = vld [vmem:[%s446 + $0x8] sm:$0xff]
      %v501 = vld [vmem:[%s446 + $0x10] sm:$0xff]
      %v502 = vld [vmem:[%s446 + $0x18] sm:$0xff]
      %v503 = vld [vmem:[%s446 + $0x20] sm:$0xff]
      %v504 = vld [vmem:[%s446 + $0x28] sm:$0xff]
      %v505 = vld [vmem:[%s446 + $0x30] sm:$0xff]
      %v506 = vld [vmem:[%s446 + $0x38] sm:$0xff]
      %v507 = vld [vmem:[%s446 + $0x40] sm:$0xff]
      %v508 = vld [vmem:[%s446 + $0x48] sm:$0xff]
      %v509 = vld [vmem:[%s446 + $0x50] sm:$0xff]
      %v510 = vld [vmem:[%s446 + $0x58] sm:$0xff]
      %v511 = vld [vmem:[%s446 + $0x60] sm:$0xff]
      %v512 = vld [vmem:[%s446 + $0x68] sm:$0xff]
      %v513 = vld [vmem:[%s446 + $0x70] sm:$0xff]
      %v514 = vld [vmem:[%s446 + $0x78] sm:$0xff]
      %v515 = vld [vmem:[%s446 + $0x80] sm:$0xff]
      %v516 = vld [vmem:[%s446 + $0x88] sm:$0xff]
      %v517 = vld [vmem:[%s446 + $0x90] sm:$0xff]
      %v518 = vld [vmem:[%s446 + $0x98] sm:$0xff]
      %v519 = vld [vmem:[%s446 + $0xa0] sm:$0xff]
      %v520 = vld [vmem:[%s446 + $0xa8] sm:$0xff]
      %v521 = vld [vmem:[%s446 + $0xb0] sm:$0xff]
      %v522 = vld [vmem:[%s446 + $0xb8] sm:$0xff]
      %v523 = vld [vmem:[%s446 + $0xc0] sm:$0xff]
      %v524 = vld [vmem:[%s446 + $0xc8] sm:$0xff]
      %v525 = vld [vmem:[%s446 + $0xd0] sm:$0xff]
      %v526 = vld [vmem:[%s446 + $0xd8] sm:$0xff]
      %v527 = vld [vmem:[%s446 + $0xe0] sm:$0xff]
      %v528 = vld [vmem:[%s446 + $0xe8] sm:$0xff]
      %v529 = vld [vmem:[%s446 + $0xf0] sm:$0xff]
      %v530 = vld [vmem:[%s446 + $0xf8] sm:$0xff]
      %v531 = vld [vmem:[%s2] sm:$0xf]
      %v532 = vld [vmem:[%s2 + $0x4] sm:$0xf]
      %v533 = vld [vmem:[%s2 + $0x8] sm:$0xf]
      %v534 = vld [vmem:[%s2 + $0xc] sm:$0xf]
      %v535 = vld [vmem:[%s2 + $0x10] sm:$0xf]
      %v536 = vld [vmem:[%s2 + $0x14] sm:$0xf]
      %v537 = vld [vmem:[%s2 + $0x18] sm:$0xf]
      %v538 = vld [vmem:[%s2 + $0x1c] sm:$0xf]
      %v539 = vld [vmem:[%s2 + $0x20] sm:$0xf]
      %v540 = vld [vmem:[%s2 + $0x24] sm:$0xf]
      %v541 = vld [vmem:[%s2 + $0x28] sm:$0xf]
      %v542 = vld [vmem:[%s2 + $0x2c] sm:$0xf]
      %v543 = vld [vmem:[%s2 + $0x30] sm:$0xf]
      %v544 = vld [vmem:[%s2 + $0x34] sm:$0xf]
      %v545 = vld [vmem:[%s2 + $0x38] sm:$0xf]
      %v546 = vld [vmem:[%s2 + $0x3c] sm:$0xf]
      %v547 = vld [vmem:[%s3] sm:$0x1]
      %v549 = vlaneseq
      %v550 = vshrl.u32 %v549, 7
      %v551 = vsub.s32 0, %v550
      %v552 = vrot.slane %v547, %v551
      %v586 = vunpack.c.l.b16 %v467
      %v587 = vunpack.c.l.b16 %v468
      %v588 = vunpack.c.l.b16 %v469
      %v589 = vunpack.c.l.b16 %v470
      %v590 = vunpack.c.l.b16 %v471
      %v591 = vunpack.c.l.b16 %v472
      %v592 = vunpack.c.l.b16 %v473
      %v593 = vunpack.c.l.b16 %v474
      %v594 = vunpack.c.l.b16 %v475
      %v595 = vunpack.c.l.b16 %v476
      %v596 = vunpack.c.l.b16 %v477
      %v597 = vunpack.c.l.b16 %v478
      %v598 = vunpack.c.l.b16 %v479
      %v599 = vunpack.c.l.b16 %v480
      %v600 = vunpack.c.l.b16 %v481
      %v601 = vunpack.c.l.b16 %v482
      %v602 = vunpack.c.l.b16 %v483
      %v603 = vunpack.c.l.b16 %v484
      %v604 = vunpack.c.l.b16 %v485
      %v605 = vunpack.c.l.b16 %v486
      %v606 = vunpack.c.l.b16 %v487
      %v607 = vunpack.c.l.b16 %v488
      %v608 = vunpack.c.l.b16 %v489
      %v609 = vunpack.c.l.b16 %v490
      %v610 = vunpack.c.l.b16 %v491
      %v611 = vunpack.c.l.b16 %v492
      %v612 = vunpack.c.l.b16 %v493
      %v613 = vunpack.c.l.b16 %v494
      %v614 = vunpack.c.l.b16 %v495
      %v615 = vunpack.c.l.b16 %v496
      %v616 = vunpack.c.l.b16 %v497
      %v617 = vunpack.c.l.b16 %v498
      %v618 = vpack.c.b16 %v587, %v586
      %v619 = vpack.c.b16 %v589, %v588
      %v620 = vpack.c.b16 %v591, %v590
      %v621 = vpack.c.b16 %v593, %v592
      %v622 = vpack.c.b16 %v595, %v594
      %v623 = vpack.c.b16 %v597, %v596
      %v624 = vpack.c.b16 %v599, %v598
      %v625 = vpack.c.b16 %v601, %v600
      %v626 = vpack.c.b16 %v603, %v602
      %v627 = vpack.c.b16 %v605, %v604
      %v628 = vpack.c.b16 %v607, %v606
      %v629 = vpack.c.b16 %v609, %v608
      %v630 = vpack.c.b16 %v611, %v610
      %v631 = vpack.c.b16 %v613, %v612
      %v632 = vpack.c.b16 %v615, %v614
      %v633 = vpack.c.b16 %v617, %v616
      %v666 = vunpack.c.l.b16 %v531
      %v667 = vunpack.c.l.b16 %v532
      %v668 = vunpack.c.l.b16 %v533
      %v669 = vunpack.c.l.b16 %v534
      %v670 = vunpack.c.l.b16 %v535
      %v671 = vunpack.c.l.b16 %v536
      %v672 = vunpack.c.l.b16 %v537
      %v673 = vunpack.c.l.b16 %v538
      %v674 = vunpack.c.l.b16 %v539
      %v675 = vunpack.c.l.b16 %v540
      %v676 = vunpack.c.l.b16 %v541
      %v677 = vunpack.c.l.b16 %v542
      %v678 = vunpack.c.l.b16 %v543
      %v679 = vunpack.c.l.b16 %v544
      %v680 = vunpack.c.l.b16 %v545
      %v681 = vunpack.c.l.b16 %v546
      %v682 = vpack.c.b16 %v667, %v666
      %v683 = vpack.c.b16 %v669, %v668
      %v684 = vpack.c.b16 %v671, %v670
      %v685 = vpack.c.b16 %v673, %v672
      %v686 = vpack.c.b16 %v675, %v674
      %v687 = vpack.c.b16 %v677, %v676
      %v688 = vpack.c.b16 %v679, %v678
      %v689 = vpack.c.b16 %v681, %v680
      %698 = vmatprep.subr.bf16.mxu0 0
      %699 = vmatpush1.bf16.msra.mxu0 %v689
      %700 = vmatprep.subr.bf16.mxu0 0
      %701 = vmatpush1.bf16.msra.mxu0 %v688
      %702 = vmatprep.subr.bf16.mxu0 0
      %703 = vmatpush1.bf16.msra.mxu0 %v687
      %704 = vmatprep.subr.bf16.mxu0 0
      %705 = vmatpush1.bf16.msra.mxu0 %v686
      %706 = vmatprep.subr.bf16.mxu0 0
      %707 = vmatpush1.bf16.msra.mxu0 %v685
      %708 = vmatprep.subr.bf16.mxu0 0
      %709 = vmatpush1.bf16.msra.mxu0 %v684
      %710 = vmatprep.subr.bf16.mxu0 0
      %711 = vmatpush1.bf16.msra.mxu0 %v683
      %712 = vmatprep.subr.bf16.mxu0 0
      %713 = vmatpush1.bf16.msra.mxu0 %v682
      %714 = vmatprep.subr.bf16.mxu0 0
      %715 = vmatpush2.bf16.msra.mxu0 0
      %716 = vmatprep.subr.bf16.mxu0 0
      %717 = vmatpush2.bf16.msra.mxu0 0
      %718 = vmatprep.subr.bf16.mxu0 0
      %719 = vmatpush2.bf16.msra.mxu0 0
      %720 = vmatprep.subr.bf16.mxu0 0
      %721 = vmatpush2.bf16.msra.mxu0 0
      %722 = vmatprep.subr.bf16.mxu0 0
      %723 = vmatpush2.bf16.msra.mxu0 0
      %724 = vmatprep.subr.bf16.mxu0 0
      %725 = vmatpush2.bf16.msra.mxu0 0
      %726 = vmatprep.subr.bf16.mxu0 0
      %727 = vmatpush2.bf16.msra.mxu0 0
      %728 = vmatprep.subr.bf16.mxu0 0
      %729 = vmatpush2.bf16.msra.mxu0 0
      %730 = vmatprep.mubr.bf16.mxu0 0
      %731 = vmatmul.mubr.bf16.gmra.mxu0 %v618
      %v732 = vpop.f32.mrf.mxu0
      %v733 = vadd.f32 %v552, %v732
      %v734 = vpop.f32.mrf.mxu0
      %v735 = vpop.f32.mrf.mxu0
      %v736 = vadd.f32 %v552, %v735
      %v737 = vpop.f32.mrf.mxu0
      %738 = vmatprep.mubr.bf16.mxu0 0
      %739 = vmatmul.mubr.bf16.gmra.mxu0 %v619
      %v740 = vpop.f32.mrf.mxu0
      %v741 = vadd.f32 %v552, %v740
      %v742 = vpop.f32.mrf.mxu0
      %v743 = vpop.f32.mrf.mxu0
      %v744 = vadd.f32 %v552, %v743
      %v745 = vpop.f32.mrf.mxu0
      %746 = vmatprep.mubr.bf16.mxu0 0
      %747 = vmatmul.mubr.bf16.gmra.mxu0 %v620
      %v748 = vpop.f32.mrf.mxu0
      %v749 = vadd.f32 %v552, %v748
      %v750 = vpop.f32.mrf.mxu0
      %v751 = vpop.f32.mrf.mxu0
      %v752 = vadd.f32 %v552, %v751
      %v753 = vpop.f32.mrf.mxu0
      %754 = vmatprep.mubr.bf16.mxu0 0
      %755 = vmatmul.mubr.bf16.gmra.mxu0 %v621
      %v756 = vpop.f32.mrf.mxu0
      %v757 = vadd.f32 %v552, %v756
      %v758 = vpop.f32.mrf.mxu0
      %v759 = vpop.f32.mrf.mxu0
      %v760 = vadd.f32 %v552, %v759
      %v761 = vpop.f32.mrf.mxu0
      %762 = vmatprep.mubr.bf16.mxu0 0
      %763 = vmatmul.mubr.bf16.gmra.mxu0 %v622
      %v764 = vpop.f32.mrf.mxu0
      %v765 = vadd.f32 %v552, %v764
      %v766 = vpop.f32.mrf.mxu0
      %v767 = vpop.f32.mrf.mxu0
      %v768 = vadd.f32 %v552, %v767
      %v769 = vpop.f32.mrf.mxu0
      %770 = vmatprep.mubr.bf16.mxu0 0
      %771 = vmatmul.mubr.bf16.gmra.mxu0 %v623
      %v772 = vpop.f32.mrf.mxu0
      %v773 = vadd.f32 %v552, %v772
      %v774 = vpop.f32.mrf.mxu0
      %v775 = vpop.f32.mrf.mxu0
      %v776 = vadd.f32 %v552, %v775
      %v777 = vpop.f32.mrf.mxu0
      %778 = vmatprep.mubr.bf16.mxu0 0
      %779 = vmatmul.mubr.bf16.gmra.mxu0 %v624
      %v780 = vpop.f32.mrf.mxu0
      %v781 = vadd.f32 %v552, %v780
      %v782 = vpop.f32.mrf.mxu0
      %v783 = vpop.f32.mrf.mxu0
      %v784 = vadd.f32 %v552, %v783
      %v785 = vpop.f32.mrf.mxu0
      %786 = vmatprep.mubr.bf16.mxu0 0
      %787 = vmatmul.mubr.bf16.gmra.mxu0 %v625
      %v788 = vpop.f32.mrf.mxu0
      %v789 = vadd.f32 %v552, %v788
      %v790 = vpop.f32.mrf.mxu0
      %v791 = vpop.f32.mrf.mxu0
      %v792 = vadd.f32 %v552, %v791
      %v793 = vpop.f32.mrf.mxu0
      %794 = vmatprep.mubr.bf16.mxu0 0
      %795 = vmatmul.mubr.bf16.gmra.mxu0 %v626
      %v796 = vpop.f32.mrf.mxu0
      %v797 = vadd.f32 %v552, %v796
      %v798 = vpop.f32.mrf.mxu0
      %v799 = vpop.f32.mrf.mxu0
      %v800 = vadd.f32 %v552, %v799
      %v801 = vpop.f32.mrf.mxu0
      %802 = vmatprep.mubr.bf16.mxu0 0
      %803 = vmatmul.mubr.bf16.gmra.mxu0 %v627
      %v804 = vpop.f32.mrf.mxu0
      %v805 = vadd.f32 %v552, %v804
      %v806 = vpop.f32.mrf.mxu0
      %v807 = vpop.f32.mrf.mxu0
      %v808 = vadd.f32 %v552, %v807
      %v809 = vpop.f32.mrf.mxu0
      %810 = vmatprep.mubr.bf16.mxu0 0
      %811 = vmatmul.mubr.bf16.gmra.mxu0 %v628
      %v812 = vpop.f32.mrf.mxu0
      %v813 = vadd.f32 %v552, %v812
      %v814 = vpop.f32.mrf.mxu0
      %v815 = vpop.f32.mrf.mxu0
      %v816 = vadd.f32 %v552, %v815
      %v817 = vpop.f32.mrf.mxu0
      %818 = vmatprep.mubr.bf16.mxu0 0
      %819 = vmatmul.mubr.bf16.gmra.mxu0 %v629
      %v820 = vpop.f32.mrf.mxu0
      %v821 = vadd.f32 %v552, %v820
      %v822 = vpop.f32.mrf.mxu0
      %v823 = vpop.f32.mrf.mxu0
      %v824 = vadd.f32 %v552, %v823
      %v825 = vpop.f32.mrf.mxu0
      %826 = vmatprep.mubr.bf16.mxu0 0
      %827 = vmatmul.mubr.bf16.gmra.mxu0 %v630
      %v828 = vpop.f32.mrf.mxu0
      %v829 = vadd.f32 %v552, %v828
      %v830 = vpop.f32.mrf.mxu0
      %v831 = vpop.f32.mrf.mxu0
      %v832 = vadd.f32 %v552, %v831
      %v833 = vpop.f32.mrf.mxu0
      %834 = vmatprep.mubr.bf16.mxu0 0
      %835 = vmatmul.mubr.bf16.gmra.mxu0 %v631
      %v836 = vpop.f32.mrf.mxu0
      %v837 = vadd.f32 %v552, %v836
      %v838 = vpop.f32.mrf.mxu0
      %v839 = vpop.f32.mrf.mxu0
      %v840 = vadd.f32 %v552, %v839
      %v841 = vpop.f32.mrf.mxu0
      %842 = vmatprep.mubr.bf16.mxu0 0
      %843 = vmatmul.mubr.bf16.gmra.mxu0 %v632
      %v844 = vpop.f32.mrf.mxu0
      %v845 = vadd.f32 %v552, %v844
      %v846 = vpop.f32.mrf.mxu0
      %v847 = vpop.f32.mrf.mxu0
      %v848 = vadd.f32 %v552, %v847
      %v849 = vpop.f32.mrf.mxu0
      %850 = vmatprep.mubr.bf16.mxu0 0
      %851 = vmatmul.mubr.bf16.gmra.mxu0 %v633
      %v852 = vpop.f32.mrf.mxu0
      %v853 = vadd.f32 %v552, %v852
      %v854 = vpop.f32.mrf.mxu0
      %v855 = vpop.f32.mrf.mxu0
      %v856 = vadd.f32 %v552, %v855
      %v857 = vpop.f32.mrf.mxu0
      %858 = vdwg.mxu0
      %v859 = vmax.f32 %v733, 0.0
      %v860 = vmax.f32 %v736, 0.0
      %v861 = vmax.f32 %v741, 0.0
      %v862 = vmax.f32 %v744, 0.0
      %v863 = vmax.f32 %v749, 0.0
      %v864 = vmax.f32 %v752, 0.0
      %v865 = vmax.f32 %v757, 0.0
      %v866 = vmax.f32 %v760, 0.0
      %v867 = vmax.f32 %v765, 0.0
      %v868 = vmax.f32 %v768, 0.0
      %v869 = vmax.f32 %v773, 0.0
      %v870 = vmax.f32 %v776, 0.0
      %v871 = vmax.f32 %v781, 0.0
      %v872 = vmax.f32 %v784, 0.0
      %v873 = vmax.f32 %v789, 0.0
      %v874 = vmax.f32 %v792, 0.0
      %v875 = vmax.f32 %v797, 0.0
      %v876 = vmax.f32 %v800, 0.0
      %v877 = vmax.f32 %v805, 0.0
      %v878 = vmax.f32 %v808, 0.0
      %v879 = vmax.f32 %v813, 0.0
      %v880 = vmax.f32 %v816, 0.0
      %v881 = vmax.f32 %v821, 0.0
      %v882 = vmax.f32 %v824, 0.0
      %v883 = vmax.f32 %v829, 0.0
      %v884 = vmax.f32 %v832, 0.0
      %v885 = vmax.f32 %v837, 0.0
      %v886 = vmax.f32 %v840, 0.0
      %v887 = vmax.f32 %v845, 0.0
      %v888 = vmax.f32 %v848, 0.0
      %v889 = vmax.f32 %v853, 0.0
      %v890 = vmax.f32 %v856, 0.0
      %v891 = vpack.c.bf16 %v860, %v859
      %v892 = vpack.c.bf16 %v862, %v861
      %v893 = vpack.c.bf16 %v864, %v863
      %v894 = vpack.c.bf16 %v866, %v865
      %v895 = vpack.c.bf16 %v868, %v867
      %v896 = vpack.c.bf16 %v870, %v869
      %v897 = vpack.c.bf16 %v872, %v871
      %v898 = vpack.c.bf16 %v874, %v873
      %v899 = vpack.c.bf16 %v876, %v875
      %v900 = vpack.c.bf16 %v878, %v877
      %v901 = vpack.c.bf16 %v880, %v879
      %v902 = vpack.c.bf16 %v882, %v881
      %v903 = vpack.c.bf16 %v884, %v883
      %v904 = vpack.c.bf16 %v886, %v885
      %v905 = vpack.c.bf16 %v888, %v887
      %v906 = vpack.c.bf16 %v890, %v889
      %v907 = vld [vmem:[%s4] sm:$0xff]
      %v908 = vld [vmem:[%s4 + $0x8] sm:$0xff]
      %v909 = vld [vmem:[%s4 + $0x10] sm:$0xff]
      %v910 = vld [vmem:[%s4 + $0x18] sm:$0xff]
      %v911 = vld [vmem:[%s4 + $0x20] sm:$0xff]
      %v912 = vld [vmem:[%s4 + $0x28] sm:$0xff]
      %v913 = vld [vmem:[%s4 + $0x30] sm:$0xff]
      %v914 = vld [vmem:[%s4 + $0x38] sm:$0xff]
      %v915 = vld [vmem:[%s4 + $0x40] sm:$0xff]
      %v916 = vld [vmem:[%s4 + $0x48] sm:$0xff]
      %v917 = vld [vmem:[%s4 + $0x50] sm:$0xff]
      %v918 = vld [vmem:[%s4 + $0x58] sm:$0xff]
      %v919 = vld [vmem:[%s4 + $0x60] sm:$0xff]
      %v920 = vld [vmem:[%s4 + $0x68] sm:$0xff]
      %v921 = vld [vmem:[%s4 + $0x70] sm:$0xff]
      %v922 = vld [vmem:[%s4 + $0x78] sm:$0xff]
      %v923 = vld [vmem:[%s5] sm:$0x3]
      %v925 = vlaneseq
      %v926 = vshrl.u32 %v925, 7
      %v927 = vsub.s32 0, %v926
      %v928 = vrot.slane %v923, %v927
      %v929 = vlaneseq
      %v930 = vshrl.u32 %v929, 7
      %v931 = vsub.s32 1, %v930
      %v932 = vrot.slane %v923, %v931
      %v951 = vunpack.c.l.b16 %v907
      %v952 = vunpack.c.h.b16 %v907
      %v953 = vunpack.c.l.b16 %v908
      %v954 = vunpack.c.h.b16 %v908
      %v955 = vunpack.c.l.b16 %v909
      %v956 = vunpack.c.h.b16 %v909
      %v957 = vunpack.c.l.b16 %v910
      %v958 = vunpack.c.h.b16 %v910
      %v959 = vunpack.c.l.b16 %v911
      %v960 = vunpack.c.h.b16 %v911
      %v961 = vunpack.c.l.b16 %v912
      %v962 = vunpack.c.h.b16 %v912
      %v963 = vunpack.c.l.b16 %v913
      %v964 = vunpack.c.h.b16 %v913
      %v965 = vunpack.c.l.b16 %v914
      %v966 = vunpack.c.h.b16 %v914
      %v967 = vunpack.c.l.b16 %v915
      %v968 = vunpack.c.h.b16 %v915
      %v969 = vunpack.c.l.b16 %v916
      %v970 = vunpack.c.h.b16 %v916
      %v971 = vunpack.c.l.b16 %v917
      %v972 = vunpack.c.h.b16 %v917
      %v973 = vunpack.c.l.b16 %v918
      %v974 = vunpack.c.h.b16 %v918
      %v975 = vunpack.c.l.b16 %v919
      %v976 = vunpack.c.h.b16 %v919
      %v977 = vunpack.c.l.b16 %v920
      %v978 = vunpack.c.h.b16 %v920
      %v979 = vunpack.c.l.b16 %v921
      %v980 = vunpack.c.h.b16 %v921
      %v981 = vunpack.c.l.b16 %v922
      %v982 = vunpack.c.h.b16 %v922
      %v983 = vpack.c.b16 %v953, %v951
      %v984 = vpack.c.b16 %v954, %v952
      %v985 = vpack.c.b16 %v957, %v955
      %v986 = vpack.c.b16 %v958, %v956
      %v987 = vpack.c.b16 %v961, %v959
      %v988 = vpack.c.b16 %v962, %v960
      %v989 = vpack.c.b16 %v965, %v963
      %v990 = vpack.c.b16 %v966, %v964
      %v991 = vpack.c.b16 %v969, %v967
      %v992 = vpack.c.b16 %v970, %v968
      %v993 = vpack.c.b16 %v973, %v971
      %v994 = vpack.c.b16 %v974, %v972
      %v995 = vpack.c.b16 %v977, %v975
      %v996 = vpack.c.b16 %v978, %v976
      %v997 = vpack.c.b16 %v981, %v979
      %v998 = vpack.c.b16 %v982, %v980
      %1015 = vmatprep.subr.bf16.mxu0 %v998
      %1016 = vmatpush1.bf16.msra.mxu0 %v997
      %1017 = vmatprep.subr.bf16.mxu0 %v996
      %1018 = vmatpush1.bf16.msra.mxu0 %v995
      %1019 = vmatprep.subr.bf16.mxu0 %v994
      %1020 = vmatpush1.bf16.msra.mxu0 %v993
      %1021 = vmatprep.subr.bf16.mxu0 %v992
      %1022 = vmatpush1.bf16.msra.mxu0 %v991
      %1023 = vmatprep.subr.bf16.mxu0 %v990
      %1024 = vmatpush1.bf16.msra.mxu0 %v989
      %1025 = vmatprep.subr.bf16.mxu0 %v988
      %1026 = vmatpush1.bf16.msra.mxu0 %v987
      %1027 = vmatprep.subr.bf16.mxu0 %v986
      %1028 = vmatpush1.bf16.msra.mxu0 %v985
      %1029 = vmatprep.subr.bf16.mxu0 %v984
      %1030 = vmatpush1.bf16.msra.mxu0 %v983
      %1031 = vmatprep.subr.bf16.mxu0 0
      %1032 = vmatpush2.bf16.msra.mxu0 0
      %1033 = vmatprep.subr.bf16.mxu0 0
      %1034 = vmatpush2.bf16.msra.mxu0 0
      %1035 = vmatprep.subr.bf16.mxu0 0
      %1036 = vmatpush2.bf16.msra.mxu0 0
      %1037 = vmatprep.subr.bf16.mxu0 0
      %1038 = vmatpush2.bf16.msra.mxu0 0
      %1039 = vmatprep.subr.bf16.mxu0 0
      %1040 = vmatpush2.bf16.msra.mxu0 0
      %1041 = vmatprep.subr.bf16.mxu0 0
      %1042 = vmatpush2.bf16.msra.mxu0 0
      %1043 = vmatprep.subr.bf16.mxu0 0
      %1044 = vmatpush2.bf16.msra.mxu0 0
      %1045 = vmatprep.subr.bf16.mxu0 0
      %1046 = vmatpush2.bf16.msra.mxu0 0
      %1047 = vmatprep.mubr.bf16.mxu0 0
      %1048 = vmatmul.mubr.bf16.gmra.mxu0 %v891
      %v1049 = vpop.f32.mrf.mxu0
      %v1050 = vadd.f32 %v928, %v1049
      %v1051 = vpop.f32.mrf.mxu0
      %v1052 = vadd.f32 %v932, %v1051
      %v1053 = vpop.f32.mrf.mxu0
      %v1054 = vadd.f32 %v928, %v1053
      %v1055 = vpop.f32.mrf.mxu0
      %v1056 = vadd.f32 %v932, %v1055
      %1057 = vmatprep.mubr.bf16.mxu0 0
      %1058 = vmatmul.mubr.bf16.gmra.mxu0 %v892
      %v1059 = vpop.f32.mrf.mxu0
      %v1060 = vadd.f32 %v928, %v1059
      %v1061 = vpop.f32.mrf.mxu0
      %v1062 = vadd.f32 %v932, %v1061
      %v1063 = vpop.f32.mrf.mxu0
      %v1064 = vadd.f32 %v928, %v1063
      %v1065 = vpop.f32.mrf.mxu0
      %v1066 = vadd.f32 %v932, %v1065
      %1067 = vmatprep.mubr.bf16.mxu0 0
      %1068 = vmatmul.mubr.bf16.gmra.mxu0 %v893
      %v1069 = vpop.f32.mrf.mxu0
      %v1070 = vadd.f32 %v928, %v1069
      %v1071 = vpop.f32.mrf.mxu0
      %v1072 = vadd.f32 %v932, %v1071
      %v1073 = vpop.f32.mrf.mxu0
      %v1074 = vadd.f32 %v928, %v1073
      %v1075 = vpop.f32.mrf.mxu0
      %v1076 = vadd.f32 %v932, %v1075
      %1077 = vmatprep.mubr.bf16.mxu0 0
      %1078 = vmatmul.mubr.bf16.gmra.mxu0 %v894
      %v1079 = vpop.f32.mrf.mxu0
      %v1080 = vadd.f32 %v928, %v1079
      %v1081 = vpop.f32.mrf.mxu0
      %v1082 = vadd.f32 %v932, %v1081
      %v1083 = vpop.f32.mrf.mxu0
      %v1084 = vadd.f32 %v928, %v1083
      %v1085 = vpop.f32.mrf.mxu0
      %v1086 = vadd.f32 %v932, %v1085
      %1087 = vmatprep.mubr.bf16.mxu0 0
      %1088 = vmatmul.mubr.bf16.gmra.mxu0 %v895
      %v1089 = vpop.f32.mrf.mxu0
      %v1090 = vadd.f32 %v928, %v1089
      %v1091 = vpop.f32.mrf.mxu0
      %v1092 = vadd.f32 %v932, %v1091
      %v1093 = vpop.f32.mrf.mxu0
      %v1094 = vadd.f32 %v928, %v1093
      %v1095 = vpop.f32.mrf.mxu0
      %v1096 = vadd.f32 %v932, %v1095
      %1097 = vmatprep.mubr.bf16.mxu0 0
      %1098 = vmatmul.mubr.bf16.gmra.mxu0 %v896
      %v1099 = vpop.f32.mrf.mxu0
      %v1100 = vadd.f32 %v928, %v1099
      %v1101 = vpop.f32.mrf.mxu0
      %v1102 = vadd.f32 %v932, %v1101
      %v1103 = vpop.f32.mrf.mxu0
      %v1104 = vadd.f32 %v928, %v1103
      %v1105 = vpop.f32.mrf.mxu0
      %v1106 = vadd.f32 %v932, %v1105
      %1107 = vmatprep.mubr.bf16.mxu0 0
      %1108 = vmatmul.mubr.bf16.gmra.mxu0 %v897
      %v1109 = vpop.f32.mrf.mxu0
      %v1110 = vadd.f32 %v928, %v1109
      %v1111 = vpop.f32.mrf.mxu0
      %v1112 = vadd.f32 %v932, %v1111
      %v1113 = vpop.f32.mrf.mxu0
      %v1114 = vadd.f32 %v928, %v1113
      %v1115 = vpop.f32.mrf.mxu0
      %v1116 = vadd.f32 %v932, %v1115
      %1117 = vmatprep.mubr.bf16.mxu0 0
      %1118 = vmatmul.mubr.bf16.gmra.mxu0 %v898
      %v1119 = vpop.f32.mrf.mxu0
      %v1120 = vadd.f32 %v928, %v1119
      %v1121 = vpop.f32.mrf.mxu0
      %v1122 = vadd.f32 %v932, %v1121
      %v1123 = vpop.f32.mrf.mxu0
      %v1124 = vadd.f32 %v928, %v1123
      %v1125 = vpop.f32.mrf.mxu0
      %v1126 = vadd.f32 %v932, %v1125
      %1127 = vmatprep.mubr.bf16.mxu0 0
      %1128 = vmatmul.mubr.bf16.gmra.mxu0 %v899
      %v1129 = vpop.f32.mrf.mxu0
      %v1130 = vadd.f32 %v928, %v1129
      %v1131 = vpop.f32.mrf.mxu0
      %v1132 = vadd.f32 %v932, %v1131
      %v1133 = vpop.f32.mrf.mxu0
      %v1134 = vadd.f32 %v928, %v1133
      %v1135 = vpop.f32.mrf.mxu0
      %v1136 = vadd.f32 %v932, %v1135
      %1137 = vmatprep.mubr.bf16.mxu0 0
      %1138 = vmatmul.mubr.bf16.gmra.mxu0 %v900
      %v1139 = vpop.f32.mrf.mxu0
      %v1140 = vadd.f32 %v928, %v1139
      %v1141 = vpop.f32.mrf.mxu0
      %v1142 = vadd.f32 %v932, %v1141
      %v1143 = vpop.f32.mrf.mxu0
      %v1144 = vadd.f32 %v928, %v1143
      %v1145 = vpop.f32.mrf.mxu0
      %v1146 = vadd.f32 %v932, %v1145
      %1147 = vmatprep.mubr.bf16.mxu0 0
      %1148 = vmatmul.mubr.bf16.gmra.mxu0 %v901
      %v1149 = vpop.f32.mrf.mxu0
      %v1150 = vadd.f32 %v928, %v1149
      %v1151 = vpop.f32.mrf.mxu0
      %v1152 = vadd.f32 %v932, %v1151
      %v1153 = vpop.f32.mrf.mxu0
      %v1154 = vadd.f32 %v928, %v1153
      %v1155 = vpop.f32.mrf.mxu0
      %v1156 = vadd.f32 %v932, %v1155
      %1157 = vmatprep.mubr.bf16.mxu0 0
      %1158 = vmatmul.mubr.bf16.gmra.mxu0 %v902
      %v1159 = vpop.f32.mrf.mxu0
      %v1160 = vadd.f32 %v928, %v1159
      %v1161 = vpop.f32.mrf.mxu0
      %v1162 = vadd.f32 %v932, %v1161
      %v1163 = vpop.f32.mrf.mxu0
      %v1164 = vadd.f32 %v928, %v1163
      %v1165 = vpop.f32.mrf.mxu0
      %v1166 = vadd.f32 %v932, %v1165
      %1167 = vmatprep.mubr.bf16.mxu0 0
      %1168 = vmatmul.mubr.bf16.gmra.mxu0 %v903
      %v1169 = vpop.f32.mrf.mxu0
      %v1170 = vadd.f32 %v928, %v1169
      %v1171 = vpop.f32.mrf.mxu0
      %v1172 = vadd.f32 %v932, %v1171
      %v1173 = vpop.f32.mrf.mxu0
      %v1174 = vadd.f32 %v928, %v1173
      %v1175 = vpop.f32.mrf.mxu0
      %v1176 = vadd.f32 %v932, %v1175
      %1177 = vmatprep.mubr.bf16.mxu0 0
      %1178 = vmatmul.mubr.bf16.gmra.mxu0 %v904
      %v1179 = vpop.f32.mrf.mxu0
      %v1180 = vadd.f32 %v928, %v1179
      %v1181 = vpop.f32.mrf.mxu0
      %v1182 = vadd.f32 %v932, %v1181
      %v1183 = vpop.f32.mrf.mxu0
      %v1184 = vadd.f32 %v928, %v1183
      %v1185 = vpop.f32.mrf.mxu0
      %v1186 = vadd.f32 %v932, %v1185
      %1187 = vmatprep.mubr.bf16.mxu0 0
      %1188 = vmatmul.mubr.bf16.gmra.mxu0 %v905
      %v1189 = vpop.f32.mrf.mxu0
      %v1190 = vadd.f32 %v928, %v1189
      %v1191 = vpop.f32.mrf.mxu0
      %v1192 = vadd.f32 %v932, %v1191
      %v1193 = vpop.f32.mrf.mxu0
      %v1194 = vadd.f32 %v928, %v1193
      %v1195 = vpop.f32.mrf.mxu0
      %v1196 = vadd.f32 %v932, %v1195
      %1197 = vmatprep.mubr.bf16.mxu0 0
      %1198 = vmatmul.mubr.bf16.gmra.mxu0 %v906
      %v1199 = vpop.f32.mrf.mxu0
      %v1200 = vadd.f32 %v928, %v1199
      %v1201 = vpop.f32.mrf.mxu0
      %v1202 = vadd.f32 %v932, %v1201
      %v1203 = vpop.f32.mrf.mxu0
      %v1204 = vadd.f32 %v928, %v1203
      %v1205 = vpop.f32.mrf.mxu0
      %v1206 = vadd.f32 %v932, %v1205
      %1207 = vdwg.mxu0
      %v1208 = vmul.f32 %v1052, 0.5
      %v1209 = vmul.f32 %v1056, 0.5
      %v1210 = vmul.f32 %v1062, 0.5
      %v1211 = vmul.f32 %v1066, 0.5
      %v1212 = vmul.f32 %v1072, 0.5
      %v1213 = vmul.f32 %v1076, 0.5
      %v1214 = vmul.f32 %v1082, 0.5
      %v1215 = vmul.f32 %v1086, 0.5
      %v1216 = vmul.f32 %v1092, 0.5
      %v1217 = vmul.f32 %v1096, 0.5
      %v1218 = vmul.f32 %v1102, 0.5
      %v1219 = vmul.f32 %v1106, 0.5
      %v1220 = vmul.f32 %v1112, 0.5
      %v1221 = vmul.f32 %v1116, 0.5
      %v1222 = vmul.f32 %v1122, 0.5
      %v1223 = vmul.f32 %v1126, 0.5
      %v1224 = vmul.f32 %v1132, 0.5
      %v1225 = vmul.f32 %v1136, 0.5
      %v1226 = vmul.f32 %v1142, 0.5
      %v1227 = vmul.f32 %v1146, 0.5
      %v1228 = vmul.f32 %v1152, 0.5
      %v1229 = vmul.f32 %v1156, 0.5
      %v1230 = vmul.f32 %v1162, 0.5
      %v1231 = vmul.f32 %v1166, 0.5
      %v1232 = vmul.f32 %v1172, 0.5
      %v1233 = vmul.f32 %v1176, 0.5
      %v1234 = vmul.f32 %v1182, 0.5
      %v1235 = vmul.f32 %v1186, 0.5
      %v1236 = vmul.f32 %v1192, 0.5
      %v1237 = vmul.f32 %v1196, 0.5
      %v1238 = vmul.f32 %v1202, 0.5
      %v1239 = vmul.f32 %v1206, 0.5
      %v1240 = vmul.f32 %v1208, 1.442695
      %v1241 = vpow.pop %v1240
      %v1242 = vmul.f32 %v1209, 1.442695
      %v1243 = vpow.pop %v1242
      %v1244 = vmul.f32 %v1210, 1.442695
      %v1245 = vpow.pop %v1244
      %v1246 = vmul.f32 %v1211, 1.442695
      %v1247 = vpow.pop %v1246
      %v1248 = vmul.f32 %v1212, 1.442695
      %v1249 = vpow.pop %v1248
      %v1250 = vmul.f32 %v1213, 1.442695
      %v1251 = vpow.pop %v1250
      %v1252 = vmul.f32 %v1214, 1.442695
      %v1253 = vpow.pop %v1252
      %v1254 = vmul.f32 %v1215, 1.442695
      %v1255 = vpow.pop %v1254
      %v1256 = vmul.f32 %v1216, 1.442695
      %v1257 = vpow.pop %v1256
      %v1258 = vmul.f32 %v1217, 1.442695
      %v1259 = vpow.pop %v1258
      %v1260 = vmul.f32 %v1218, 1.442695
      %v1261 = vpow.pop %v1260
      %v1262 = vmul.f32 %v1219, 1.442695
      %v1263 = vpow.pop %v1262
      %v1264 = vmul.f32 %v1220, 1.442695
      %v1265 = vpow.pop %v1264
      %v1266 = vmul.f32 %v1221, 1.442695
      %v1267 = vpow.pop %v1266
      %v1268 = vmul.f32 %v1222, 1.442695
      %v1269 = vpow.pop %v1268
      %v1270 = vmul.f32 %v1223, 1.442695
      %v1271 = vpow.pop %v1270
      %v1272 = vmul.f32 %v1224, 1.442695
      %v1273 = vpow.pop %v1272
      %v1274 = vmul.f32 %v1225, 1.442695
      %v1275 = vpow.pop %v1274
      %v1276 = vmul.f32 %v1226, 1.442695
      %v1277 = vpow.pop %v1276
      %v1278 = vmul.f32 %v1227, 1.442695
      %v1279 = vpow.pop %v1278
      %v1280 = vmul.f32 %v1228, 1.442695
      %v1281 = vpow.pop %v1280
      %v1282 = vmul.f32 %v1229, 1.442695
      %v1283 = vpow.pop %v1282
      %v1284 = vmul.f32 %v1230, 1.442695
      %v1285 = vpow.pop %v1284
      %v1286 = vmul.f32 %v1231, 1.442695
      %v1287 = vpow.pop %v1286
      %v1288 = vmul.f32 %v1232, 1.442695
      %v1289 = vpow.pop %v1288
      %v1290 = vmul.f32 %v1233, 1.442695
      %v1291 = vpow.pop %v1290
      %v1292 = vmul.f32 %v1234, 1.442695
      %v1293 = vpow.pop %v1292
      %v1294 = vmul.f32 %v1235, 1.442695
      %v1295 = vpow.pop %v1294
      %v1296 = vmul.f32 %v1236, 1.442695
      %v1297 = vpow.pop %v1296
      %v1298 = vmul.f32 %v1237, 1.442695
      %v1299 = vpow.pop %v1298
      %v1300 = vmul.f32 %v1238, 1.442695
      %v1301 = vpow.pop %v1300
      %v1302 = vmul.f32 %v1239, 1.442695
      %v1303 = vpow.pop %v1302
      %v1304 = vmul.f32 %v499, %v1241
      %v1305 = vmul.f32 %v500, %v1243
      %v1306 = vmul.f32 %v501, %v1245
      %v1307 = vmul.f32 %v502, %v1247
      %v1308 = vmul.f32 %v503, %v1249
      %v1309 = vmul.f32 %v504, %v1251
      %v1310 = vmul.f32 %v505, %v1253
      %v1311 = vmul.f32 %v506, %v1255
      %v1312 = vmul.f32 %v507, %v1257
      %v1313 = vmul.f32 %v508, %v1259
      %v1314 = vmul.f32 %v509, %v1261
      %v1315 = vmul.f32 %v510, %v1263
      %v1316 = vmul.f32 %v511, %v1265
      %v1317 = vmul.f32 %v512, %v1267
      %v1318 = vmul.f32 %v513, %v1269
      %v1319 = vmul.f32 %v514, %v1271
      %v1320 = vmul.f32 %v515, %v1273
      %v1321 = vmul.f32 %v516, %v1275
      %v1322 = vmul.f32 %v517, %v1277
      %v1323 = vmul.f32 %v518, %v1279
      %v1324 = vmul.f32 %v519, %v1281
      %v1325 = vmul.f32 %v520, %v1283
      %v1326 = vmul.f32 %v521, %v1285
      %v1327 = vmul.f32 %v522, %v1287
      %v1328 = vmul.f32 %v523, %v1289
      %v1329 = vmul.f32 %v524, %v1291
      %v1330 = vmul.f32 %v525, %v1293
      %v1331 = vmul.f32 %v526, %v1295
      %v1332 = vmul.f32 %v527, %v1297
      %v1333 = vmul.f32 %v528, %v1299
      %v1334 = vmul.f32 %v529, %v1301
      %v1335 = vmul.f32 %v530, %v1303
      %v1336 = vadd.f32 %v1304, %v1050
      %v1337 = vadd.f32 %v1305, %v1054
      %v1338 = vadd.f32 %v1306, %v1060
      %v1339 = vadd.f32 %v1307, %v1064
      %v1340 = vadd.f32 %v1308, %v1070
      %v1341 = vadd.f32 %v1309, %v1074
      %v1342 = vadd.f32 %v1310, %v1080
      %v1343 = vadd.f32 %v1311, %v1084
      %v1344 = vadd.f32 %v1312, %v1090
      %v1345 = vadd.f32 %v1313, %v1094
      %v1346 = vadd.f32 %v1314, %v1100
      %v1347 = vadd.f32 %v1315, %v1104
      %v1348 = vadd.f32 %v1316, %v1110
      %v1349 = vadd.f32 %v1317, %v1114
      %v1350 = vadd.f32 %v1318, %v1120
      %v1351 = vadd.f32 %v1319, %v1124
      %v1352 = vadd.f32 %v1320, %v1130
      %v1353 = vadd.f32 %v1321, %v1134
      %v1354 = vadd.f32 %v1322, %v1140
      %v1355 = vadd.f32 %v1323, %v1144
      %v1356 = vadd.f32 %v1324, %v1150
      %v1357 = vadd.f32 %v1325, %v1154
      %v1358 = vadd.f32 %v1326, %v1160
      %v1359 = vadd.f32 %v1327, %v1164
      %v1360 = vadd.f32 %v1328, %v1170
      %v1361 = vadd.f32 %v1329, %v1174
      %v1362 = vadd.f32 %v1330, %v1180
      %v1363 = vadd.f32 %v1331, %v1184
      %v1364 = vadd.f32 %v1332, %v1190
      %v1365 = vadd.f32 %v1333, %v1194
      %v1366 = vadd.f32 %v1334, %v1200
      %v1367 = vadd.f32 %v1335, %v1204
      %v1368 = vpack.c.bf16 %v1337, %v1336
      %v1369 = vpack.c.bf16 %v1339, %v1338
      %v1370 = vpack.c.bf16 %v1341, %v1340
      %v1371 = vpack.c.bf16 %v1343, %v1342
      %v1372 = vpack.c.bf16 %v1345, %v1344
      %v1373 = vpack.c.bf16 %v1347, %v1346
      %v1374 = vpack.c.bf16 %v1349, %v1348
      %v1375 = vpack.c.bf16 %v1351, %v1350
      %v1376 = vpack.c.bf16 %v1353, %v1352
      %v1377 = vpack.c.bf16 %v1355, %v1354
      %v1378 = vpack.c.bf16 %v1357, %v1356
      %v1379 = vpack.c.bf16 %v1359, %v1358
      %v1380 = vpack.c.bf16 %v1361, %v1360
      %v1381 = vpack.c.bf16 %v1363, %v1362
      %v1382 = vpack.c.bf16 %v1365, %v1364
      %v1383 = vpack.c.bf16 %v1367, %v1366
      %v1384 = vld [vmem:[%s6] sm:$0xf]
      %v1385 = vld [vmem:[%s6 + $0x4] sm:$0xf]
      %v1386 = vld [vmem:[%s6 + $0x8] sm:$0xf]
      %v1387 = vld [vmem:[%s6 + $0xc] sm:$0xf]
      %v1388 = vld [vmem:[%s6 + $0x10] sm:$0xf]
      %v1389 = vld [vmem:[%s6 + $0x14] sm:$0xf]
      %v1390 = vld [vmem:[%s6 + $0x18] sm:$0xf]
      %v1391 = vld [vmem:[%s6 + $0x1c] sm:$0xf]
      %v1392 = vld [vmem:[%s6 + $0x20] sm:$0xf]
      %v1393 = vld [vmem:[%s6 + $0x24] sm:$0xf]
      %v1394 = vld [vmem:[%s6 + $0x28] sm:$0xf]
      %v1395 = vld [vmem:[%s6 + $0x2c] sm:$0xf]
      %v1396 = vld [vmem:[%s6 + $0x30] sm:$0xf]
      %v1397 = vld [vmem:[%s6 + $0x34] sm:$0xf]
      %v1398 = vld [vmem:[%s6 + $0x38] sm:$0xf]
      %v1399 = vld [vmem:[%s6 + $0x3c] sm:$0xf]
      %v1400 = vld [vmem:[%s7] sm:$0x1]
      %v1402 = vlaneseq
      %v1403 = vshrl.u32 %v1402, 7
      %v1404 = vsub.s32 0, %v1403
      %v1405 = vrot.slane %v1400, %v1404
      %v1423 = vunpack.c.l.b16 %v1384
      %v1424 = vunpack.c.l.b16 %v1385
      %v1425 = vunpack.c.l.b16 %v1386
      %v1426 = vunpack.c.l.b16 %v1387
      %v1427 = vunpack.c.l.b16 %v1388
      %v1428 = vunpack.c.l.b16 %v1389
      %v1429 = vunpack.c.l.b16 %v1390
      %v1430 = vunpack.c.l.b16 %v1391
      %v1431 = vunpack.c.l.b16 %v1392
      %v1432 = vunpack.c.l.b16 %v1393
      %v1433 = vunpack.c.l.b16 %v1394
      %v1434 = vunpack.c.l.b16 %v1395
      %v1435 = vunpack.c.l.b16 %v1396
      %v1436 = vunpack.c.l.b16 %v1397
      %v1437 = vunpack.c.l.b16 %v1398
      %v1438 = vunpack.c.l.b16 %v1399
      %v1439 = vpack.c.b16 %v1424, %v1423
      %v1440 = vpack.c.b16 %v1426, %v1425
      %v1441 = vpack.c.b16 %v1428, %v1427
      %v1442 = vpack.c.b16 %v1430, %v1429
      %v1443 = vpack.c.b16 %v1432, %v1431
      %v1444 = vpack.c.b16 %v1434, %v1433
      %v1445 = vpack.c.b16 %v1436, %v1435
      %v1446 = vpack.c.b16 %v1438, %v1437
      %1455 = vmatprep.subr.bf16.mxu0 0
      %1456 = vmatpush1.bf16.msra.mxu0 %v1446
      %1457 = vmatprep.subr.bf16.mxu0 0
      %1458 = vmatpush1.bf16.msra.mxu0 %v1445
      %1459 = vmatprep.subr.bf16.mxu0 0
      %1460 = vmatpush1.bf16.msra.mxu0 %v1444
      %1461 = vmatprep.subr.bf16.mxu0 0
      %1462 = vmatpush1.bf16.msra.mxu0 %v1443
      %1463 = vmatprep.subr.bf16.mxu0 0
      %1464 = vmatpush1.bf16.msra.mxu0 %v1442
      %1465 = vmatprep.subr.bf16.mxu0 0
      %1466 = vmatpush1.bf16.msra.mxu0 %v1441
      %1467 = vmatprep.subr.bf16.mxu0 0
      %1468 = vmatpush1.bf16.msra.mxu0 %v1440
      %1469 = vmatprep.subr.bf16.mxu0 0
      %1470 = vmatpush1.bf16.msra.mxu0 %v1439
      %1471 = vmatprep.subr.bf16.mxu0 0
      %1472 = vmatpush2.bf16.msra.mxu0 0
      %1473 = vmatprep.subr.bf16.mxu0 0
      %1474 = vmatpush2.bf16.msra.mxu0 0
      %1475 = vmatprep.subr.bf16.mxu0 0
      %1476 = vmatpush2.bf16.msra.mxu0 0
      %1477 = vmatprep.subr.bf16.mxu0 0
      %1478 = vmatpush2.bf16.msra.mxu0 0
      %1479 = vmatprep.subr.bf16.mxu0 0
      %1480 = vmatpush2.bf16.msra.mxu0 0
      %1481 = vmatprep.subr.bf16.mxu0 0
      %1482 = vmatpush2.bf16.msra.mxu0 0
      %1483 = vmatprep.subr.bf16.mxu0 0
      %1484 = vmatpush2.bf16.msra.mxu0 0
      %1485 = vmatprep.subr.bf16.mxu0 0
      %1486 = vmatpush2.bf16.msra.mxu0 0
      %1487 = vmatprep.mubr.bf16.mxu0 0
      %1488 = vmatmul.mubr.bf16.gmra.mxu0 %v1368
      %v1489 = vpop.f32.mrf.mxu0
      %v1490 = vadd.f32 %v1405, %v1489
      %v1491 = vpop.f32.mrf.mxu0
      %v1492 = vpop.f32.mrf.mxu0
      %v1493 = vadd.f32 %v1405, %v1492
      %v1494 = vpop.f32.mrf.mxu0
      %1495 = vmatprep.mubr.bf16.mxu0 0
      %1496 = vmatmul.mubr.bf16.gmra.mxu0 %v1369
      %v1497 = vpop.f32.mrf.mxu0
      %v1498 = vadd.f32 %v1405, %v1497
      %v1499 = vpop.f32.mrf.mxu0
      %v1500 = vpop.f32.mrf.mxu0
      %v1501 = vadd.f32 %v1405, %v1500
      %v1502 = vpop.f32.mrf.mxu0
      %1503 = vmatprep.mubr.bf16.mxu0 0
      %1504 = vmatmul.mubr.bf16.gmra.mxu0 %v1370
      %v1505 = vpop.f32.mrf.mxu0
      %v1506 = vadd.f32 %v1405, %v1505
      %v1507 = vpop.f32.mrf.mxu0
      %v1508 = vpop.f32.mrf.mxu0
      %v1509 = vadd.f32 %v1405, %v1508
      %v1510 = vpop.f32.mrf.mxu0
      %1511 = vmatprep.mubr.bf16.mxu0 0
      %1512 = vmatmul.mubr.bf16.gmra.mxu0 %v1371
      %v1513 = vpop.f32.mrf.mxu0
      %v1514 = vadd.f32 %v1405, %v1513
      %v1515 = vpop.f32.mrf.mxu0
      %v1516 = vpop.f32.mrf.mxu0
      %v1517 = vadd.f32 %v1405, %v1516
      %v1518 = vpop.f32.mrf.mxu0
      %1519 = vmatprep.mubr.bf16.mxu0 0
      %1520 = vmatmul.mubr.bf16.gmra.mxu0 %v1372
      %v1521 = vpop.f32.mrf.mxu0
      %v1522 = vadd.f32 %v1405, %v1521
      %v1523 = vpop.f32.mrf.mxu0
      %v1524 = vpop.f32.mrf.mxu0
      %v1525 = vadd.f32 %v1405, %v1524
      %v1526 = vpop.f32.mrf.mxu0
      %1527 = vmatprep.mubr.bf16.mxu0 0
      %1528 = vmatmul.mubr.bf16.gmra.mxu0 %v1373
      %v1529 = vpop.f32.mrf.mxu0
      %v1530 = vadd.f32 %v1405, %v1529
      %v1531 = vpop.f32.mrf.mxu0
      %v1532 = vpop.f32.mrf.mxu0
      %v1533 = vadd.f32 %v1405, %v1532
      %v1534 = vpop.f32.mrf.mxu0
      %1535 = vmatprep.mubr.bf16.mxu0 0
      %1536 = vmatmul.mubr.bf16.gmra.mxu0 %v1374
      %v1537 = vpop.f32.mrf.mxu0
      %v1538 = vadd.f32 %v1405, %v1537
      %v1539 = vpop.f32.mrf.mxu0
      %v1540 = vpop.f32.mrf.mxu0
      %v1541 = vadd.f32 %v1405, %v1540
      %v1542 = vpop.f32.mrf.mxu0
      %1543 = vmatprep.mubr.bf16.mxu0 0
      %1544 = vmatmul.mubr.bf16.gmra.mxu0 %v1375
      %v1545 = vpop.f32.mrf.mxu0
      %v1546 = vadd.f32 %v1405, %v1545
      %v1547 = vpop.f32.mrf.mxu0
      %v1548 = vpop.f32.mrf.mxu0
      %v1549 = vadd.f32 %v1405, %v1548
      %v1550 = vpop.f32.mrf.mxu0
      %1551 = vmatprep.mubr.bf16.mxu0 0
      %1552 = vmatmul.mubr.bf16.gmra.mxu0 %v1376
      %v1553 = vpop.f32.mrf.mxu0
      %v1554 = vadd.f32 %v1405, %v1553
      %v1555 = vpop.f32.mrf.mxu0
      %v1556 = vpop.f32.mrf.mxu0
      %v1557 = vadd.f32 %v1405, %v1556
      %v1558 = vpop.f32.mrf.mxu0
      %1559 = vmatprep.mubr.bf16.mxu0 0
      %1560 = vmatmul.mubr.bf16.gmra.mxu0 %v1377
      %v1561 = vpop.f32.mrf.mxu0
      %v1562 = vadd.f32 %v1405, %v1561
      %v1563 = vpop.f32.mrf.mxu0
      %v1564 = vpop.f32.mrf.mxu0
      %v1565 = vadd.f32 %v1405, %v1564
      %v1566 = vpop.f32.mrf.mxu0
      %1567 = vmatprep.mubr.bf16.mxu0 0
      %1568 = vmatmul.mubr.bf16.gmra.mxu0 %v1378
      %v1569 = vpop.f32.mrf.mxu0
      %v1570 = vadd.f32 %v1405, %v1569
      %v1571 = vpop.f32.mrf.mxu0
      %v1572 = vpop.f32.mrf.mxu0
      %v1573 = vadd.f32 %v1405, %v1572
      %v1574 = vpop.f32.mrf.mxu0
      %1575 = vmatprep.mubr.bf16.mxu0 0
      %1576 = vmatmul.mubr.bf16.gmra.mxu0 %v1379
      %v1577 = vpop.f32.mrf.mxu0
      %v1578 = vadd.f32 %v1405, %v1577
      %v1579 = vpop.f32.mrf.mxu0
      %v1580 = vpop.f32.mrf.mxu0
      %v1581 = vadd.f32 %v1405, %v1580
      %v1582 = vpop.f32.mrf.mxu0
      %1583 = vmatprep.mubr.bf16.mxu0 0
      %1584 = vmatmul.mubr.bf16.gmra.mxu0 %v1380
      %v1585 = vpop.f32.mrf.mxu0
      %v1586 = vadd.f32 %v1405, %v1585
      %v1587 = vpop.f32.mrf.mxu0
      %v1588 = vpop.f32.mrf.mxu0
      %v1589 = vadd.f32 %v1405, %v1588
      %v1590 = vpop.f32.mrf.mxu0
      %1591 = vmatprep.mubr.bf16.mxu0 0
      %1592 = vmatmul.mubr.bf16.gmra.mxu0 %v1381
      %v1593 = vpop.f32.mrf.mxu0
      %v1594 = vadd.f32 %v1405, %v1593
      %v1595 = vpop.f32.mrf.mxu0
      %v1596 = vpop.f32.mrf.mxu0
      %v1597 = vadd.f32 %v1405, %v1596
      %v1598 = vpop.f32.mrf.mxu0
      %1599 = vmatprep.mubr.bf16.mxu0 0
      %1600 = vmatmul.mubr.bf16.gmra.mxu0 %v1382
      %v1601 = vpop.f32.mrf.mxu0
      %v1602 = vadd.f32 %v1405, %v1601
      %v1603 = vpop.f32.mrf.mxu0
      %v1604 = vpop.f32.mrf.mxu0
      %v1605 = vadd.f32 %v1405, %v1604
      %v1606 = vpop.f32.mrf.mxu0
      %1607 = vmatprep.mubr.bf16.mxu0 0
      %1608 = vmatmul.mubr.bf16.gmra.mxu0 %v1383
      %v1609 = vpop.f32.mrf.mxu0
      %v1610 = vadd.f32 %v1405, %v1609
      %v1611 = vpop.f32.mrf.mxu0
      %v1612 = vpop.f32.mrf.mxu0
      %v1613 = vadd.f32 %v1405, %v1612
      %v1614 = vpop.f32.mrf.mxu0
      %1615 = vdwg.mxu0
      %v1616 = vmax.f32 %v1490, 0.0
      %v1617 = vmax.f32 %v1493, 0.0
      %v1618 = vmax.f32 %v1498, 0.0
      %v1619 = vmax.f32 %v1501, 0.0
      %v1620 = vmax.f32 %v1506, 0.0
      %v1621 = vmax.f32 %v1509, 0.0
      %v1622 = vmax.f32 %v1514, 0.0
      %v1623 = vmax.f32 %v1517, 0.0
      %v1624 = vmax.f32 %v1522, 0.0
      %v1625 = vmax.f32 %v1525, 0.0
      %v1626 = vmax.f32 %v1530, 0.0
      %v1627 = vmax.f32 %v1533, 0.0
      %v1628 = vmax.f32 %v1538, 0.0
      %v1629 = vmax.f32 %v1541, 0.0
      %v1630 = vmax.f32 %v1546, 0.0
      %v1631 = vmax.f32 %v1549, 0.0
      %v1632 = vmax.f32 %v1554, 0.0
      %v1633 = vmax.f32 %v1557, 0.0
      %v1634 = vmax.f32 %v1562, 0.0
      %v1635 = vmax.f32 %v1565, 0.0
      %v1636 = vmax.f32 %v1570, 0.0
      %v1637 = vmax.f32 %v1573, 0.0
      %v1638 = vmax.f32 %v1578, 0.0
      %v1639 = vmax.f32 %v1581, 0.0
      %v1640 = vmax.f32 %v1586, 0.0
      %v1641 = vmax.f32 %v1589, 0.0
      %v1642 = vmax.f32 %v1594, 0.0
      %v1643 = vmax.f32 %v1597, 0.0
      %v1644 = vmax.f32 %v1602, 0.0
      %v1645 = vmax.f32 %v1605, 0.0
      %v1646 = vmax.f32 %v1610, 0.0
      %v1647 = vmax.f32 %v1613, 0.0
      %v1648 = vpack.c.bf16 %v1617, %v1616
      %v1649 = vpack.c.bf16 %v1619, %v1618
      %v1650 = vpack.c.bf16 %v1621, %v1620
      %v1651 = vpack.c.bf16 %v1623, %v1622
      %v1652 = vpack.c.bf16 %v1625, %v1624
      %v1653 = vpack.c.bf16 %v1627, %v1626
      %v1654 = vpack.c.bf16 %v1629, %v1628
      %v1655 = vpack.c.bf16 %v1631, %v1630
      %v1656 = vpack.c.bf16 %v1633, %v1632
      %v1657 = vpack.c.bf16 %v1635, %v1634
      %v1658 = vpack.c.bf16 %v1637, %v1636
      %v1659 = vpack.c.bf16 %v1639, %v1638
      %v1660 = vpack.c.bf16 %v1641, %v1640
      %v1661 = vpack.c.bf16 %v1643, %v1642
      %v1662 = vpack.c.bf16 %v1645, %v1644
      %v1663 = vpack.c.bf16 %v1647, %v1646
      %v1664 = vld [vmem:[%s8] sm:$0xf]
      %v1665 = vld [vmem:[%s8 + $0x4] sm:$0xf]
      %v1666 = vld [vmem:[%s8 + $0x8] sm:$0xf]
      %v1667 = vld [vmem:[%s8 + $0xc] sm:$0xf]
      %v1668 = vld [vmem:[%s8 + $0x10] sm:$0xf]
      %v1669 = vld [vmem:[%s8 + $0x14] sm:$0xf]
      %v1670 = vld [vmem:[%s8 + $0x18] sm:$0xf]
      %v1671 = vld [vmem:[%s8 + $0x1c] sm:$0xf]
      %v1672 = vld [vmem:[%s8 + $0x20] sm:$0xf]
      %v1673 = vld [vmem:[%s8 + $0x24] sm:$0xf]
      %v1674 = vld [vmem:[%s8 + $0x28] sm:$0xf]
      %v1675 = vld [vmem:[%s8 + $0x2c] sm:$0xf]
      %v1676 = vld [vmem:[%s8 + $0x30] sm:$0xf]
      %v1677 = vld [vmem:[%s8 + $0x34] sm:$0xf]
      %v1678 = vld [vmem:[%s8 + $0x38] sm:$0xf]
      %v1679 = vld [vmem:[%s8 + $0x3c] sm:$0xf]
      %v1680 = vld [vmem:[%s9] sm:$0x1]
      %v1682 = vlaneseq
      %v1683 = vshrl.u32 %v1682, 7
      %v1684 = vsub.s32 0, %v1683
      %v1685 = vrot.slane %v1680, %v1684
      %v1703 = vunpack.c.l.b16 %v1664
      %v1704 = vunpack.c.l.b16 %v1665
      %v1705 = vunpack.c.l.b16 %v1666
      %v1706 = vunpack.c.l.b16 %v1667
      %v1707 = vunpack.c.l.b16 %v1668
      %v1708 = vunpack.c.l.b16 %v1669
      %v1709 = vunpack.c.l.b16 %v1670
      %v1710 = vunpack.c.l.b16 %v1671
      %v1711 = vunpack.c.l.b16 %v1672
      %v1712 = vunpack.c.l.b16 %v1673
      %v1713 = vunpack.c.l.b16 %v1674
      %v1714 = vunpack.c.l.b16 %v1675
      %v1715 = vunpack.c.l.b16 %v1676
      %v1716 = vunpack.c.l.b16 %v1677
      %v1717 = vunpack.c.l.b16 %v1678
      %v1718 = vunpack.c.l.b16 %v1679
      %v1719 = vpack.c.b16 %v1704, %v1703
      %v1720 = vpack.c.b16 %v1706, %v1705
      %v1721 = vpack.c.b16 %v1708, %v1707
      %v1722 = vpack.c.b16 %v1710, %v1709
      %v1723 = vpack.c.b16 %v1712, %v1711
      %v1724 = vpack.c.b16 %v1714, %v1713
      %v1725 = vpack.c.b16 %v1716, %v1715
      %v1726 = vpack.c.b16 %v1718, %v1717
      %1735 = vmatprep.subr.bf16.mxu0 0
      %1736 = vmatpush1.bf16.msra.mxu0 %v1726
      %1737 = vmatprep.subr.bf16.mxu0 0
      %1738 = vmatpush1.bf16.msra.mxu0 %v1725
      %1739 = vmatprep.subr.bf16.mxu0 0
      %1740 = vmatpush1.bf16.msra.mxu0 %v1724
      %1741 = vmatprep.subr.bf16.mxu0 0
      %1742 = vmatpush1.bf16.msra.mxu0 %v1723
      %1743 = vmatprep.subr.bf16.mxu0 0
      %1744 = vmatpush1.bf16.msra.mxu0 %v1722
      %1745 = vmatprep.subr.bf16.mxu0 0
      %1746 = vmatpush1.bf16.msra.mxu0 %v1721
      %1747 = vmatprep.subr.bf16.mxu0 0
      %1748 = vmatpush1.bf16.msra.mxu0 %v1720
      %1749 = vmatprep.subr.bf16.mxu0 0
      %1750 = vmatpush1.bf16.msra.mxu0 %v1719
      %1751 = vmatprep.subr.bf16.mxu0 0
      %1752 = vmatpush2.bf16.msra.mxu0 0
      %1753 = vmatprep.subr.bf16.mxu0 0
      %1754 = vmatpush2.bf16.msra.mxu0 0
      %1755 = vmatprep.subr.bf16.mxu0 0
      %1756 = vmatpush2.bf16.msra.mxu0 0
      %1757 = vmatprep.subr.bf16.mxu0 0
      %1758 = vmatpush2.bf16.msra.mxu0 0
      %1759 = vmatprep.subr.bf16.mxu0 0
      %1760 = vmatpush2.bf16.msra.mxu0 0
      %1761 = vmatprep.subr.bf16.mxu0 0
      %1762 = vmatpush2.bf16.msra.mxu0 0
      %1763 = vmatprep.subr.bf16.mxu0 0
      %1764 = vmatpush2.bf16.msra.mxu0 0
      %1765 = vmatprep.subr.bf16.mxu0 0
      %1766 = vmatpush2.bf16.msra.mxu0 0
      %1767 = vmatprep.mubr.bf16.mxu0 0
      %1768 = vmatmul.mubr.bf16.gmra.mxu0 %v1648
      %v1769 = vpop.f32.mrf.mxu0
      %v1770 = vadd.f32 %v1685, %v1769
      %v1771 = vpop.f32.mrf.mxu0
      %v1772 = vpop.f32.mrf.mxu0
      %v1773 = vadd.f32 %v1685, %v1772
      %v1774 = vpop.f32.mrf.mxu0
      %1775 = vmatprep.mubr.bf16.mxu0 0
      %1776 = vmatmul.mubr.bf16.gmra.mxu0 %v1649
      %v1777 = vpop.f32.mrf.mxu0
      %v1778 = vadd.f32 %v1685, %v1777
      %v1779 = vpop.f32.mrf.mxu0
      %v1780 = vpop.f32.mrf.mxu0
      %v1781 = vadd.f32 %v1685, %v1780
      %v1782 = vpop.f32.mrf.mxu0
      %1783 = vmatprep.mubr.bf16.mxu0 0
      %1784 = vmatmul.mubr.bf16.gmra.mxu0 %v1650
      %v1785 = vpop.f32.mrf.mxu0
      %v1786 = vadd.f32 %v1685, %v1785
      %v1787 = vpop.f32.mrf.mxu0
      %v1788 = vpop.f32.mrf.mxu0
      %v1789 = vadd.f32 %v1685, %v1788
      %v1790 = vpop.f32.mrf.mxu0
      %1791 = vmatprep.mubr.bf16.mxu0 0
      %1792 = vmatmul.mubr.bf16.gmra.mxu0 %v1651
      %v1793 = vpop.f32.mrf.mxu0
      %v1794 = vadd.f32 %v1685, %v1793
      %v1795 = vpop.f32.mrf.mxu0
      %v1796 = vpop.f32.mrf.mxu0
      %v1797 = vadd.f32 %v1685, %v1796
      %v1798 = vpop.f32.mrf.mxu0
      %1799 = vmatprep.mubr.bf16.mxu0 0
      %1800 = vmatmul.mubr.bf16.gmra.mxu0 %v1652
      %v1801 = vpop.f32.mrf.mxu0
      %v1802 = vadd.f32 %v1685, %v1801
      %v1803 = vpop.f32.mrf.mxu0
      %v1804 = vpop.f32.mrf.mxu0
      %v1805 = vadd.f32 %v1685, %v1804
      %v1806 = vpop.f32.mrf.mxu0
      %1807 = vmatprep.mubr.bf16.mxu0 0
      %1808 = vmatmul.mubr.bf16.gmra.mxu0 %v1653
      %v1809 = vpop.f32.mrf.mxu0
      %v1810 = vadd.f32 %v1685, %v1809
      %v1811 = vpop.f32.mrf.mxu0
      %v1812 = vpop.f32.mrf.mxu0
      %v1813 = vadd.f32 %v1685, %v1812
      %v1814 = vpop.f32.mrf.mxu0
      %1815 = vmatprep.mubr.bf16.mxu0 0
      %1816 = vmatmul.mubr.bf16.gmra.mxu0 %v1654
      %v1817 = vpop.f32.mrf.mxu0
      %v1818 = vadd.f32 %v1685, %v1817
      %v1819 = vpop.f32.mrf.mxu0
      %v1820 = vpop.f32.mrf.mxu0
      %v1821 = vadd.f32 %v1685, %v1820
      %v1822 = vpop.f32.mrf.mxu0
      %1823 = vmatprep.mubr.bf16.mxu0 0
      %1824 = vmatmul.mubr.bf16.gmra.mxu0 %v1655
      %v1825 = vpop.f32.mrf.mxu0
      %v1826 = vadd.f32 %v1685, %v1825
      %v1827 = vpop.f32.mrf.mxu0
      %v1828 = vpop.f32.mrf.mxu0
      %v1829 = vadd.f32 %v1685, %v1828
      %v1830 = vpop.f32.mrf.mxu0
      %1831 = vmatprep.mubr.bf16.mxu0 0
      %1832 = vmatmul.mubr.bf16.gmra.mxu0 %v1656
      %v1833 = vpop.f32.mrf.mxu0
      %v1834 = vadd.f32 %v1685, %v1833
      %v1835 = vpop.f32.mrf.mxu0
      %v1836 = vpop.f32.mrf.mxu0
      %v1837 = vadd.f32 %v1685, %v1836
      %v1838 = vpop.f32.mrf.mxu0
      %1839 = vmatprep.mubr.bf16.mxu0 0
      %1840 = vmatmul.mubr.bf16.gmra.mxu0 %v1657
      %v1841 = vpop.f32.mrf.mxu0
      %v1842 = vadd.f32 %v1685, %v1841
      %v1843 = vpop.f32.mrf.mxu0
      %v1844 = vpop.f32.mrf.mxu0
      %v1845 = vadd.f32 %v1685, %v1844
      %v1846 = vpop.f32.mrf.mxu0
      %1847 = vmatprep.mubr.bf16.mxu0 0
      %1848 = vmatmul.mubr.bf16.gmra.mxu0 %v1658
      %v1849 = vpop.f32.mrf.mxu0
      %v1850 = vadd.f32 %v1685, %v1849
      %v1851 = vpop.f32.mrf.mxu0
      %v1852 = vpop.f32.mrf.mxu0
      %v1853 = vadd.f32 %v1685, %v1852
      %v1854 = vpop.f32.mrf.mxu0
      %1855 = vmatprep.mubr.bf16.mxu0 0
      %1856 = vmatmul.mubr.bf16.gmra.mxu0 %v1659
      %v1857 = vpop.f32.mrf.mxu0
      %v1858 = vadd.f32 %v1685, %v1857
      %v1859 = vpop.f32.mrf.mxu0
      %v1860 = vpop.f32.mrf.mxu0
      %v1861 = vadd.f32 %v1685, %v1860
      %v1862 = vpop.f32.mrf.mxu0
      %1863 = vmatprep.mubr.bf16.mxu0 0
      %1864 = vmatmul.mubr.bf16.gmra.mxu0 %v1660
      %v1865 = vpop.f32.mrf.mxu0
      %v1866 = vadd.f32 %v1685, %v1865
      %v1867 = vpop.f32.mrf.mxu0
      %v1868 = vpop.f32.mrf.mxu0
      %v1869 = vadd.f32 %v1685, %v1868
      %v1870 = vpop.f32.mrf.mxu0
      %1871 = vmatprep.mubr.bf16.mxu0 0
      %1872 = vmatmul.mubr.bf16.gmra.mxu0 %v1661
      %v1873 = vpop.f32.mrf.mxu0
      %v1874 = vadd.f32 %v1685, %v1873
      %v1875 = vpop.f32.mrf.mxu0
      %v1876 = vpop.f32.mrf.mxu0
      %v1877 = vadd.f32 %v1685, %v1876
      %v1878 = vpop.f32.mrf.mxu0
      %1879 = vmatprep.mubr.bf16.mxu0 0
      %1880 = vmatmul.mubr.bf16.gmra.mxu0 %v1662
      %v1881 = vpop.f32.mrf.mxu0
      %v1882 = vadd.f32 %v1685, %v1881
      %v1883 = vpop.f32.mrf.mxu0
      %v1884 = vpop.f32.mrf.mxu0
      %v1885 = vadd.f32 %v1685, %v1884
      %v1886 = vpop.f32.mrf.mxu0
      %1887 = vmatprep.mubr.bf16.mxu0 0
      %1888 = vmatmul.mubr.bf16.gmra.mxu0 %v1663
      %v1889 = vpop.f32.mrf.mxu0
      %v1890 = vadd.f32 %v1685, %v1889
      %v1891 = vpop.f32.mrf.mxu0
      %v1892 = vpop.f32.mrf.mxu0
      %v1893 = vadd.f32 %v1685, %v1892
      %v1894 = vpop.f32.mrf.mxu0
      %1895 = vdwg.mxu0
      %1896 = vst [vmem:[%s452] sm:$0xff] %v1050
      %1897 = vst [vmem:[%s452 + $0x8] sm:$0xff] %v1054
      %1898 = vst [vmem:[%s452 + $0x10] sm:$0xff] %v1060
      %1899 = vst [vmem:[%s452 + $0x18] sm:$0xff] %v1064
      %1900 = vst [vmem:[%s452 + $0x20] sm:$0xff] %v1070
      %1901 = vst [vmem:[%s452 + $0x28] sm:$0xff] %v1074
      %1902 = vst [vmem:[%s452 + $0x30] sm:$0xff] %v1080
      %1903 = vst [vmem:[%s452 + $0x38] sm:$0xff] %v1084
      %1904 = vst [vmem:[%s452 + $0x40] sm:$0xff] %v1090
      %1905 = vst [vmem:[%s452 + $0x48] sm:$0xff] %v1094
      %1906 = vst [vmem:[%s452 + $0x50] sm:$0xff] %v1100
      %1907 = vst [vmem:[%s452 + $0x58] sm:$0xff] %v1104
      %1908 = vst [vmem:[%s452 + $0x60] sm:$0xff] %v1110
      %1909 = vst [vmem:[%s452 + $0x68] sm:$0xff] %v1114
      %1910 = vst [vmem:[%s452 + $0x70] sm:$0xff] %v1120
      %1911 = vst [vmem:[%s452 + $0x78] sm:$0xff] %v1124
      %1912 = vst [vmem:[%s452 + $0x80] sm:$0xff] %v1130
      %1913 = vst [vmem:[%s452 + $0x88] sm:$0xff] %v1134
      %1914 = vst [vmem:[%s452 + $0x90] sm:$0xff] %v1140
      %1915 = vst [vmem:[%s452 + $0x98] sm:$0xff] %v1144
      %1916 = vst [vmem:[%s452 + $0xa0] sm:$0xff] %v1150
      %1917 = vst [vmem:[%s452 + $0xa8] sm:$0xff] %v1154
      %1918 = vst [vmem:[%s452 + $0xb0] sm:$0xff] %v1160
      %1919 = vst [vmem:[%s452 + $0xb8] sm:$0xff] %v1164
      %1920 = vst [vmem:[%s452 + $0xc0] sm:$0xff] %v1170
      %1921 = vst [vmem:[%s452 + $0xc8] sm:$0xff] %v1174
      %1922 = vst [vmem:[%s452 + $0xd0] sm:$0xff] %v1180
      %1923 = vst [vmem:[%s452 + $0xd8] sm:$0xff] %v1184
      %1924 = vst [vmem:[%s452 + $0xe0] sm:$0xff] %v1190
      %1925 = vst [vmem:[%s452 + $0xe8] sm:$0xff] %v1194
      %1926 = vst [vmem:[%s452 + $0xf0] sm:$0xff] %v1200
      %1927 = vst [vmem:[%s452 + $0xf8] sm:$0xff] %v1204
      %1928 = vst [vmem:[%s458] sm:$0xff] %v1052
      %1929 = vst [vmem:[%s458 + $0x8] sm:$0xff] %v1056
      %1930 = vst [vmem:[%s458 + $0x10] sm:$0xff] %v1062
      %1931 = vst [vmem:[%s458 + $0x18] sm:$0xff] %v1066
      %1932 = vst [vmem:[%s458 + $0x20] sm:$0xff] %v1072
      %1933 = vst [vmem:[%s458 + $0x28] sm:$0xff] %v1076
      %1934 = vst [vmem:[%s458 + $0x30] sm:$0xff] %v1082
      %1935 = vst [vmem:[%s458 + $0x38] sm:$0xff] %v1086
      %1936 = vst [vmem:[%s458 + $0x40] sm:$0xff] %v1092
      %1937 = vst [vmem:[%s458 + $0x48] sm:$0xff] %v1096
      %1938 = vst [vmem:[%s458 + $0x50] sm:$0xff] %v1102
      %1939 = vst [vmem:[%s458 + $0x58] sm:$0xff] %v1106
      %1940 = vst [vmem:[%s458 + $0x60] sm:$0xff] %v1112
      %1941 = vst [vmem:[%s458 + $0x68] sm:$0xff] %v1116
      %1942 = vst [vmem:[%s458 + $0x70] sm:$0xff] %v1122
      %1943 = vst [vmem:[%s458 + $0x78] sm:$0xff] %v1126
      %1944 = vst [vmem:[%s458 + $0x80] sm:$0xff] %v1132
      %1945 = vst [vmem:[%s458 + $0x88] sm:$0xff] %v1136
      %1946 = vst [vmem:[%s458 + $0x90] sm:$0xff] %v1142
      %1947 = vst [vmem:[%s458 + $0x98] sm:$0xff] %v1146
      %1948 = vst [vmem:[%s458 + $0xa0] sm:$0xff] %v1152
      %1949 = vst [vmem:[%s458 + $0xa8] sm:$0xff] %v1156
      %1950 = vst [vmem:[%s458 + $0xb0] sm:$0xff] %v1162
      %1951 = vst [vmem:[%s458 + $0xb8] sm:$0xff] %v1166
      %1952 = vst [vmem:[%s458 + $0xc0] sm:$0xff] %v1172
      %1953 = vst [vmem:[%s458 + $0xc8] sm:$0xff] %v1176
      %1954 = vst [vmem:[%s458 + $0xd0] sm:$0xff] %v1182
      %1955 = vst [vmem:[%s458 + $0xd8] sm:$0xff] %v1186
      %1956 = vst [vmem:[%s458 + $0xe0] sm:$0xff] %v1192
      %1957 = vst [vmem:[%s458 + $0xe8] sm:$0xff] %v1196
      %1958 = vst [vmem:[%s458 + $0xf0] sm:$0xff] %v1202
      %1959 = vst [vmem:[%s458 + $0xf8] sm:$0xff] %v1206
      %1960 = vst [vmem:[%s464] sm:$0xff] %v1770
      %1961 = vst [vmem:[%s464 + $0x8] sm:$0xff] %v1773
      %1962 = vst [vmem:[%s464 + $0x10] sm:$0xff] %v1778
      %1963 = vst [vmem:[%s464 + $0x18] sm:$0xff] %v1781
      %1964 = vst [vmem:[%s464 + $0x20] sm:$0xff] %v1786
      %1965 = vst [vmem:[%s464 + $0x28] sm:$0xff] %v1789
      %1966 = vst [vmem:[%s464 + $0x30] sm:$0xff] %v1794
      %1967 = vst [vmem:[%s464 + $0x38] sm:$0xff] %v1797
      %1968 = vst [vmem:[%s464 + $0x40] sm:$0xff] %v1802
      %1969 = vst [vmem:[%s464 + $0x48] sm:$0xff] %v1805
      %1970 = vst [vmem:[%s464 + $0x50] sm:$0xff] %v1810
      %1971 = vst [vmem:[%s464 + $0x58] sm:$0xff] %v1813
      %1972 = vst [vmem:[%s464 + $0x60] sm:$0xff] %v1818
      %1973 = vst [vmem:[%s464 + $0x68] sm:$0xff] %v1821
      %1974 = vst [vmem:[%s464 + $0x70] sm:$0xff] %v1826
      %1975 = vst [vmem:[%s464 + $0x78] sm:$0xff] %v1829
      %1976 = vst [vmem:[%s464 + $0x80] sm:$0xff] %v1834
      %1977 = vst [vmem:[%s464 + $0x88] sm:$0xff] %v1837
      %1978 = vst [vmem:[%s464 + $0x90] sm:$0xff] %v1842
      %1979 = vst [vmem:[%s464 + $0x98] sm:$0xff] %v1845
      %1980 = vst [vmem:[%s464 + $0xa0] sm:$0xff] %v1850
      %1981 = vst [vmem:[%s464 + $0xa8] sm:$0xff] %v1853
      %1982 = vst [vmem:[%s464 + $0xb0] sm:$0xff] %v1858
      %1983 = vst [vmem:[%s464 + $0xb8] sm:$0xff] %v1861
      %1984 = vst [vmem:[%s464 + $0xc0] sm:$0xff] %v1866
      %1985 = vst [vmem:[%s464 + $0xc8] sm:$0xff] %v1869
      %1986 = vst [vmem:[%s464 + $0xd0] sm:$0xff] %v1874
      %1987 = vst [vmem:[%s464 + $0xd8] sm:$0xff] %v1877
      %1988 = vst [vmem:[%s464 + $0xe0] sm:$0xff] %v1882
      %1989 = vst [vmem:[%s464 + $0xe8] sm:$0xff] %v1885
      %1990 = vst [vmem:[%s464 + $0xf0] sm:$0xff] %v1890
      %1991 = vst [vmem:[%s464 + $0xf8] sm:$0xff] %v1893
      %s1992 = smul.u32 32, %s24
      %p1993 = scmp.lt.s32.totalorder %s1992, 127
      %s1994 = scalar_select %p1993, %s1992, 127
      %s1995 = smul.addr %s1994, 8
      %s1996 = scalar_lea.vmem %s10, %s1995
      %s1997 = smul.u32 32, %s24
      %p1998 = scmp.lt.s32.totalorder %s1997, 127
      %s1999 = scalar_select %p1998, %s1997, 127
      %s2000 = smul.addr %s1999, 8
      %s2001 = scalar_lea.vmem %s11, %s2000
      %s2002 = smul.u32 32, %s24
      %p2003 = scmp.lt.s32.totalorder %s2002, 127
      %s2004 = scalar_select %p2003, %s2002, 127
      %s2005 = smul.addr %s2004, 8
      %s2006 = scalar_lea.vmem %s12, %s2005
      // Predicated region
      $region61: #{vae_forward.1} parent=59 // pred_check
        %p2007 = pneg %p262
      $region62: #{vae_forward.1} parent=59 // pred_check_branch
        %2009 = sbr.rel (%p2007) target = $region64
      $region63: #{vae_forward.1} parent=59 // pred_region
        %s2010 = smul.u32 32, %s24
      $region64: #{vae_forward.1} parent=59 // pred_fallthru
        _
      // Predicated region
      $region65: #{vae_forward.1} parent=59 // pred_check
        %p2011 = pneg %p288
      $region66: #{vae_forward.1} parent=59 // pred_check_branch
        %2013 = sbr.rel (%p2011) target = $region68
      $region67: #{vae_forward.1} parent=59 // pred_region
        %s2014 = smul.u32 32, %s24
      $region68: #{vae_forward.1} parent=59 // pred_fallthru
        _
      // Predicated region
      $region69: #{vae_forward.1} parent=59 // pred_check
        %p2015 = pneg %p314
      $region70: #{vae_forward.1} parent=59 // pred_check_branch
        %2017 = sbr.rel (%p2015) target = $region72
      $region71: #{vae_forward.1} parent=59 // pred_region
        %s2018 = smul.u32 32, %s24
      $region72: #{vae_forward.1} parent=59 // pred_fallthru
        _
    $region60: #{vae_forward.1} parent=5 // pred_fallthru
      _
    %p2019 = scmp.le.s32.totalorder 2, %s19
    // Predicated region
    $region73: #{vae_forward.1} parent=5 // pred_check
      %p2020 = pneg %p2019
    $region74: #{vae_forward.1} parent=5 // pred_check_branch
      %2022 = sbr.rel (%p2020) target = $region76
    $region75: #{vae_forward.1} parent=5 // pred_region
      %s2023 = ssub.s32 %s19, 2
      // Predicated region
      $region77: #{vae_forward.1} parent=75 // pred_check
        %p2024 = pneg %p268
      $region78: #{vae_forward.1} parent=75 // pred_check_branch
        %2026 = sbr.rel (%p2024) target = $region80
      $region79: #{vae_forward.1} parent=75 // pred_region
        %s2027 = smul.u32 32, %s25
        %p2028 = scmp.lt.s32.totalorder %s2027, 127
        %s2029 = scalar_select %p2028, %s2027, 127
        %s2030 = smul.addr %s2029, 8
        %s2031 = scalar_lea.vmem %s10, %s2030
      $region80: #{vae_forward.1} parent=75 // pred_fallthru
        _
      // Predicated region
      $region81: #{vae_forward.1} parent=75 // pred_check
        %p2032 = pneg %p294
      $region82: #{vae_forward.1} parent=75 // pred_check_branch
        %2034 = sbr.rel (%p2032) target = $region84
      $region83: #{vae_forward.1} parent=75 // pred_region
        %s2035 = smul.u32 32, %s25
        %p2036 = scmp.lt.s32.totalorder %s2035, 127
        %s2037 = scalar_select %p2036, %s2035, 127
        %s2038 = smul.addr %s2037, 8
        %s2039 = scalar_lea.vmem %s11, %s2038
      $region84: #{vae_forward.1} parent=75 // pred_fallthru
        _
      // Predicated region
      $region85: #{vae_forward.1} parent=75 // pred_check
        %p2040 = pneg %p320
      $region86: #{vae_forward.1} parent=75 // pred_check_branch
        %2042 = sbr.rel (%p2040) target = $region88
      $region87: #{vae_forward.1} parent=75 // pred_region
        %s2043 = smul.u32 32, %s25
        %p2044 = scmp.lt.s32.totalorder %s2043, 127
        %s2045 = scalar_select %p2044, %s2043, 127
        %s2046 = smul.addr %s2045, 8
        %s2047 = scalar_lea.vmem %s12, %s2046
      $region88: #{vae_forward.1} parent=75 // pred_fallthru
        _
    $region76: #{vae_forward.1} parent=5 // pred_fallthru
      _
  $region6: #{vae_forward.1} parent=0 // loop_footer
    %s23 = sadd.s32 1, %s19
  $region7: #{vae_forward.1} parent=0 // loop_footer_branch
    %18 = sbr.rel target = $region3
  $region8: #{vae_forward.1} parent=0 // loop_exit
    _

</llo_original>
